<compile_context>
chip_gen: v7x
topology: tpu7x:2x2x1
jax: 0.10.0
libtpu: 0.0.40
codegen_flags: <defaults>
</compile_context>

<pallas_src>
import math

import jax
import jax.numpy as jnp
from jax.experimental import pallas as pl
from jax.experimental.pallas import tpu as pltpu

HIDDEN = 128        # config.hidden (view hidden size == attention units)
MLP_HIDDEN = 128    # hidden width hard-coded inside Dense()
NUM_VIEWS = 4
NUM_HEADS = 4
HEAD_OUT = 2
OUT_W = NUM_HEADS * HEAD_OUT     # 8: fused head logits per row
SCORE_PAD = 8                    # lane padding of the attention w2 column
NEG_INF = -1e30     # masked_fill value (finite so fully-masked rows stay finite)


def _round_up(x, m):
    return ((x + m - 1) // m) * m


def _gelu_tanh(x):
    # exactly the GeLU the PyTorch module writes (tanh approximation), in f32
    return 0.5 * x * (1.0 + jnp.tanh(x * 0.7978845608 * (1.0 + 0.044715 * x * x)))


def _mvn_kernel(x_ref, bias_ref,
                wa1_ref, wa2_ref,
                w1_ref, b1_ref, w2_ref, b2_ref,
                w1h_ref, b1h_ref, w2h_ref, b2h_ref,
                y_ref):
    f32 = jnp.float32
    bf16 = jnp.bfloat16
    nv, tm, h = x_ref.shape

    x = x_ref[...]                               # (4, TM, H)  bf16 view stack
    bias = bias_ref[...]                         # (TM, 4)     f32 additive mask (0 / -1e30)

    # ---- MaskMlpAttention: fused projection + MXU score reduction --------
    # One (4TM,H)@(H,H) matmul for all views; the 128-lane score sum is an
    # (4TM,H)@(H,8) matmul (col 0 carries w2) instead of an XLU reduction.
    k_flat = x.reshape(nv * tm, h)               # tile-aligned no-op (tm % 16 == 0, bf16)
    t = jnp.tanh(jnp.dot(k_flat, wa1_ref[...], preferred_element_type=f32))   # (4TM, H) f32
    s = jnp.dot(t.astype(bf16), wa2_ref[...], preferred_element_type=f32)     # (4TM, 8)
    scores = [s[v * tm:(v + 1) * tm, 0:1] + bias[:, v:v + 1] for v in range(nv)]

    m = jnp.maximum(jnp.maximum(scores[0], scores[1]),
                    jnp.maximum(scores[2], scores[3]))
    e = [jnp.exp(sc - m) for sc in scores]
    inv_z = pl.reciprocal(e[0] + e[1] + e[2] + e[3], approx=True)              # EUP
    att = (e[0] * x[0] + e[1] * x[1]
           + e[2] * x[2] + e[3] * x[3]) * inv_z                                # (TM, H) f32

    # ---- trunk Dense(H, H): Linear -> GeLU -> Dropout(p=0.0) -> Linear ---
    h1 = jnp.dot(att.astype(bf16), w1_ref[...], preferred_element_type=f32) + b1_ref[...]
    h1 = _gelu_tanh(h1)
    trunk = jnp.dot(h1.astype(bf16), w2_ref[...], preferred_element_type=f32) + b2_ref[...]

    # ---- 4 heads Dense(H, 2): first layers concat along N, second layers
    # packed block-diagonally into (4*128, 8) -> narrow (TM, 8) logit slab.
    hh = jnp.dot(trunk.astype(bf16), w1h_ref[...], preferred_element_type=f32) + b1h_ref[...]
    hh = _gelu_tanh(hh)
    y = jnp.dot(hh.astype(bf16), w2h_ref[...], preferred_element_type=f32) + b2h_ref[...]
    y_ref[...] = y.astype(y_ref.dtype)


def pack_params(params):
    """One-time packing of the module parameters into the kernel layout (bf16 weights).
    Call once at init; reuse the result on every forward call."""
    f32, bf16 = jnp.float32, jnp.bfloat16
    H = params["att_w1"].shape[0]
    HH = NUM_HEADS * MLP_HIDDEN

    wa2 = jnp.zeros((H, SCORE_PAD), f32).at[:, 0].set(params["att_w2"])
    w1h = jnp.concatenate([params[f"head{i}_w1"] for i in range(NUM_HEADS)], axis=1)   # (H, 512)
    b1h = jnp.concatenate([params[f"head{i}_b1"] for i in range(NUM_HEADS)], axis=0)   # (512,)
    w2h = jnp.zeros((HH, OUT_W), f32)
    b2h = jnp.zeros((OUT_W,), f32)
    for i in range(NUM_HEADS):
        w2h = w2h.at[i * MLP_HIDDEN:(i + 1) * MLP_HIDDEN,
                     i * HEAD_OUT:(i + 1) * HEAD_OUT].set(params[f"head{i}_w2"])
        b2h = b2h.at[i * HEAD_OUT:(i + 1) * HEAD_OUT].set(params[f"head{i}_b2"])

    return {
        "wa1": params["att_w1"].astype(bf16),
        "wa2": wa2.astype(bf16),
        "w1": params["w1"].astype(bf16),
        "b1": params["b1"].reshape(1, -1).astype(f32),
        "w2": params["w2"].astype(bf16),
        "b2": params["b2"].reshape(1, -1).astype(f32),
        "w1h": w1h.astype(bf16),
        "b1h": b1h.reshape(1, -1).astype(f32),
        "w2h": w2h.astype(bf16),
        "b2h": b2h.reshape(1, -1).astype(f32),
    }


def mask_multiview_logits(views, view_mask, packed, *, tile_m=1024):
    """views: 4 arrays [B, H]; view_mask: [B, 4] bool/0-1 -> (y1..y4), each [B, 2]."""
    B, H = views[0].shape
    HH = NUM_HEADS * MLP_HIDDEN

    # Batch tile: multiple of 16 (bf16 sublane packing -> in-kernel reshape is
    # a no-op), sized so big batches get >= ~4 grid steps (DMA pipelining +
    # v7x 2-TC sharding), capped at 1024 for the v7x VMEM budget.
    TM = max(16, min(_round_up(tile_m, 16), 1024, _round_up(pl.cdiv(B, 4), 16)))
    B_pad = _round_up(B, TM)
    grid = (B_pad // TM,)

    # bf16 view stream + additive mask bias; zero-pad batch so every block is
    # full (padded rows have zero keys / zero bias -> finite, discarded later).
    x = jnp.stack(views, axis=0).astype(jnp.bfloat16)                  # (4, B, H)
    bias = jnp.where(view_mask, 0.0, NEG_INF).astype(jnp.float32)      # (B, 4)
    if B_pad != B:
        x = jnp.pad(x, ((0, 0), (0, B_pad - B), (0, 0)))
        bias = jnp.pad(bias, ((0, B_pad - B), (0, 0)))

    const = lambda a: pl.BlockSpec(a.shape, lambda i: (0, 0))          # VMEM-resident weights

    flops = 2 * B_pad * (NUM_VIEWS * H * H + NUM_VIEWS * H * SCORE_PAD
                         + H * MLP_HIDDEN + MLP_HIDDEN * H
                         + H * HH + HH * OUT_W)
    transcendentals = B_pad * (NUM_VIEWS * H + NUM_VIEWS + 1 + MLP_HIDDEN + HH)
    bytes_accessed = (2 * NUM_VIEWS * B_pad * H                        # bf16 views
                      + 4 * B_pad * NUM_VIEWS + 4 * B_pad * OUT_W      # bias + logits
                      + 2 * (H * H + H * SCORE_PAD + H * MLP_HIDDEN
                             + MLP_HIDDEN * H + H * HH + HH * OUT_W)   # bf16 weights
                      + 4 * (MLP_HIDDEN + H + HH + OUT_W))             # f32 biases

    y_pad = pl.pallas_call(
        _mvn_kernel,
        out_shape=jax.ShapeDtypeStruct((B_pad, OUT_W), jnp.float32),
        grid_spec=pl.GridSpec(
            grid=grid,
            in_specs=[
                pl.BlockSpec((NUM_VIEWS, TM, H), lambda i: (0, i, 0)),   # stacked bf16 views
                pl.BlockSpec((TM, NUM_VIEWS), lambda i: (i, 0)),         # additive mask bias
                const(packed["wa1"]), const(packed["wa2"]),              # attention
                const(packed["w1"]), const(packed["b1"]),                # trunk L1
                const(packed["w2"]), const(packed["b2"]),                # trunk L2
                const(packed["w1h"]), const(packed["b1h"]),              # fused-heads L1
                const(packed["w2h"]), const(packed["b2h"]),              # fused-heads L2 (block-diag)
            ],
            out_specs=pl.BlockSpec((TM, OUT_W), lambda i: (i, 0)),
        ),
        compiler_params=pltpu.CompilerParams(
            dimension_semantics=("parallel",)),      # 2-TC sharding on v7x; harmless elsewhere
        cost_estimate=pl.CostEstimate(flops=flops,
                                      transcendentals=transcendentals,
                                      bytes_accessed=bytes_accessed),
    )(x, bias,
      packed["wa1"], packed["wa2"],
      packed["w1"], packed["b1"], packed["w2"], packed["b2"],
      packed["w1h"], packed["b1h"], packed["w2h"], packed["b2h"])

    logits = y_pad[:B]
    return tuple(logits[:, i * HEAD_OUT:(i + 1) * HEAD_OUT] for i in range(NUM_HEADS))


def _cross_entropy(logits, labels):
    # nn.CrossEntropyLoss (mean reduction) — scalar loss, plain JAX
    logp = jax.nn.log_softmax(logits.astype(jnp.float32), axis=-1)
    picked = jnp.take_along_axis(logp, labels[:, None].astype(jnp.int32), axis=-1)[:, 0]
    return -jnp.mean(picked)


def mask_multiview_network_forward(views, view_mask, label_dict, packed, *, tile_m=1024):
    y1, y2, y3, y4 = mask_multiview_logits(views, view_mask, packed, tile_m=tile_m)
    loss = (_cross_entropy(y1, label_dict["labels1"])
            + _cross_entropy(y2, label_dict["labels2"])
            + _cross_entropy(y3, label_dict["labels3"])
            + _cross_entropy(y4, label_dict["labels4"]))
    return loss, y1, y2, y3, y4


def init_params(key, hidden=HIDDEN):
    """Matches the PyTorch module: attention Linears use default PyTorch init
    (uniform ±1/sqrt(fan_in), no bias); Dense weights are xavier_uniform_ with
    default bias init. Weights stored as [in, out] for the x @ W convention."""
    ks = list(jax.random.split(key, 24))
    p = {}

    def uni(k, shape, bound):
        return jax.random.uniform(k, shape, jnp.float32, -bound, bound)

    p["att_w1"] = uni(ks[0], (hidden, hidden), 1.0 / math.sqrt(hidden))
    p["att_w2"] = uni(ks[1], (hidden,), 1.0 / math.sqrt(hidden))

    def dense_init(k_w1, k_b1, k_w2, k_b2, in_f, out_f):
        w1 = uni(k_w1, (in_f, MLP_HIDDEN), math.sqrt(6.0 / (in_f + MLP_HIDDEN)))
        b1 = uni(k_b1, (MLP_HIDDEN,), 1.0 / math.sqrt(in_f))
        w2 = uni(k_w2, (MLP_HIDDEN, out_f), math.sqrt(6.0 / (MLP_HIDDEN + out_f)))
        b2 = uni(k_b2, (out_f,), 1.0 / math.sqrt(MLP_HIDDEN))
        return w1, b1, w2, b2

    p["w1"], p["b1"], p["w2"], p["b2"] = dense_init(ks[2], ks[3], ks[4], ks[5], hidden, hidden)
    for i in range(NUM_HEADS):
        base = 6 + 4 * i
        (p[f"head{i}_w1"], p[f"head{i}_b1"],
         p[f"head{i}_w2"], p[f"head{i}_b2"]) = dense_init(
            ks[base], ks[base + 1], ks[base + 2], ks[base + 3], hidden, HEAD_OUT)
    return p


def reference_forward(views, view_mask, label_dict, params):
    """Pure-JAX f32 reference of the same forward pass."""
    key = jnp.stack(views, axis=1)                                      # (B, 4, H)
    t = jnp.tanh(jnp.einsum("bvh,hu->bvu", key, params["att_w1"]))
    scores = jnp.einsum("bvu,u->bv", t, params["att_w2"])
    scores = jnp.where(view_mask, scores, NEG_INF)
    w = jax.nn.softmax(scores, axis=-1)
    hidden = jnp.einsum("bv,bvh->bh", w, key)

    def dense(x, w1, b1, w2, b2):
        return _gelu_tanh(x @ w1 + b1) @ w2 + b2

    hidden = dense(hidden, params["w1"], params["b1"], params["w2"], params["b2"])
    ys = [dense(hidden, params[f"head{i}_w1"], params[f"head{i}_b1"],
                params[f"head{i}_w2"], params[f"head{i}_b2"]) for i in range(NUM_HEADS)]
    loss = sum(_cross_entropy(y, label_dict[f"labels{i + 1}"]) for i, y in enumerate(ys))
    return loss, ys


if __name__ == "__main__":
    root = jax.random.PRNGKey(0)
    kp, kv, km, kl = jax.random.split(root, 4)

    B = 8
    params = init_params(kp, HIDDEN)
    packed = pack_params(params)            # one-time weight packing (bf16, fused heads)

    vkeys = jax.random.split(kv, NUM_VIEWS)
    views = tuple(jax.random.normal(vkeys[i], (B, HIDDEN), jnp.float32)
                  for i in range(NUM_VIEWS))

    # view 0 always present; remaining views randomly masked out
    rest = jax.random.bernoulli(km, 0.7, (B, NUM_VIEWS - 1))
    view_mask = jnp.concatenate([jnp.ones((B, 1), dtype=bool), rest], axis=1)

    lkeys = jax.random.split(kl, NUM_HEADS)
    label_dict = {f"labels{i + 1}": jax.random.randint(lkeys[i], (B,), 0, 2)
                  for i in range(NUM_HEADS)}

    loss, y1, y2, y3, y4 = mask_multiview_network_forward(views, view_mask, label_dict, packed)
    loss, y1, y2, y3, y4 = jax.block_until_ready((loss, y1, y2, y3, y4))

    loss_ref, ys_ref = reference_forward(views, view_mask, label_dict, params)

    # bf16 views/weights on the MXU (f32 accumulation) + approx reciprocal
    # -> relaxed tolerance vs the f32 reference
    for y, yr in zip((y1, y2, y3, y4), ys_ref):
        assert y.shape == (B, HEAD_OUT)
        assert jnp.allclose(y, yr, atol=4e-2, rtol=4e-2)
    assert jnp.allclose(loss, loss_ref, atol=4e-2, rtol=4e-2)

    print("KERNEL_OK")
</pallas_src>

<mosaic_0001>
module attributes {stable_mosaic.version = 11 : i64} {
  func.func @_mvn_kernel(%arg0: i32, %arg1: memref<4x16x128xbf16, #tpu.memory_space<vmem>>, %arg2: memref<16x4xf32, #tpu.memory_space<vmem>>, %arg3: memref<128x128xbf16, #tpu.memory_space<vmem>>, %arg4: memref<128x8xbf16, #tpu.memory_space<vmem>>, %arg5: memref<128x128xbf16, #tpu.memory_space<vmem>>, %arg6: memref<1x128xf32, #tpu.memory_space<vmem>>, %arg7: memref<128x128xbf16, #tpu.memory_space<vmem>>, %arg8: memref<1x128xf32, #tpu.memory_space<vmem>>, %arg9: memref<128x512xbf16, #tpu.memory_space<vmem>>, %arg10: memref<1x512xf32, #tpu.memory_space<vmem>>, %arg11: memref<512x8xbf16, #tpu.memory_space<vmem>>, %arg12: memref<1x8xf32, #tpu.memory_space<vmem>>, %arg13: memref<16x8xf32, #tpu.memory_space<vmem>>) attributes {dimension_semantics = [#tpu.dimension_semantics<parallel>], iteration_bounds = array<i64: 1>, scalar_prefetch = 0 : i64, scratch_operands = 0 : i64, tpu.core_type = #tpu.core_type<tc>, window_params = [{transform_indices = @transform_0, window_bounds = array<i64: 4, 16, 128>}, {transform_indices = @transform_1, window_bounds = array<i64: 16, 4>}, {pipeline_mode = #tpu.pipeline_mode<synchronous>, transform_indices = @transform_2, window_bounds = array<i64: 128, 128>}, {pipeline_mode = #tpu.pipeline_mode<synchronous>, transform_indices = @transform_3, window_bounds = array<i64: 128, 8>}, {pipeline_mode = #tpu.pipeline_mode<synchronous>, transform_indices = @transform_4, window_bounds = array<i64: 128, 128>}, {pipeline_mode = #tpu.pipeline_mode<synchronous>, transform_indices = @transform_5, window_bounds = array<i64: 1, 128>}, {pipeline_mode = #tpu.pipeline_mode<synchronous>, transform_indices = @transform_6, window_bounds = array<i64: 128, 128>}, {pipeline_mode = #tpu.pipeline_mode<synchronous>, transform_indices = @transform_7, window_bounds = array<i64: 1, 128>}, {pipeline_mode = #tpu.pipeline_mode<synchronous>, transform_indices = @transform_8, window_bounds = array<i64: 128, 512>}, {pipeline_mode = #tpu.pipeline_mode<synchronous>, transform_indices = @transform_9, window_bounds = array<i64: 1, 512>}, {pipeline_mode = #tpu.pipeline_mode<synchronous>, transform_indices = @transform_10, window_bounds = array<i64: 512, 8>}, {pipeline_mode = #tpu.pipeline_mode<synchronous>, transform_indices = @transform_11, window_bounds = array<i64: 1, 8>}, {transform_indices = @transform_12, window_bounds = array<i64: 16, 8>}]} {
    %c0 = arith.constant 0 : index
    %c0_0 = arith.constant 0 : index
    %c0_1 = arith.constant 0 : index
    %0 = vector.load %arg1[%c0, %c0_0, %c0_1] : memref<4x16x128xbf16, #tpu.memory_space<vmem>>, vector<4x16x128xbf16>
    %c0_2 = arith.constant 0 : index
    %c0_3 = arith.constant 0 : index
    %1 = vector.load %arg2[%c0_2, %c0_3] : memref<16x4xf32, #tpu.memory_space<vmem>>, vector<16x4xf32>
    %2 = vector.shape_cast %0 : vector<4x16x128xbf16> to vector<64x128xbf16>
    %c0_4 = arith.constant 0 : index
    %c0_5 = arith.constant 0 : index
    %3 = vector.load %arg3[%c0_4, %c0_5] : memref<128x128xbf16, #tpu.memory_space<vmem>>, vector<128x128xbf16>
    %cst = arith.constant dense<0.000000e+00> : vector<64x128xf32>
    %4 = tpu.matmul %2, %3, %cst {dimension_numbers = #tpu.dot_dimension_numbers<[1], [0], [0], [1], [0, 0, 1, 1], [], []>} : vector<64x128xbf16>, vector<128x128xbf16>, vector<64x128xf32> -> vector<64x128xf32>
    %5 = math.tanh %4 : vector<64x128xf32>
    %6 = arith.truncf %5 : vector<64x128xf32> to vector<64x128xbf16>
    %c0_6 = arith.constant 0 : index
    %c0_7 = arith.constant 0 : index
    %7 = vector.load %arg4[%c0_6, %c0_7] : memref<128x8xbf16, #tpu.memory_space<vmem>>, vector<128x8xbf16>
    %cst_8 = arith.constant dense<0.000000e+00> : vector<64x8xf32>
    %8 = tpu.matmul %6, %7, %cst_8 {dimension_numbers = #tpu.dot_dimension_numbers<[1], [0], [0], [1], [0, 0, 1, 1], [], []>} : vector<64x128xbf16>, vector<128x8xbf16>, vector<64x8xf32> -> vector<64x8xf32>
    %9 = vector.extract_strided_slice %8 {offsets = [0, 0], sizes = [16, 1], strides = [1, 1]} : vector<64x8xf32> to vector<16x1xf32>
    %10 = vector.extract_strided_slice %1 {offsets = [0, 0], sizes = [16, 1], strides = [1, 1]} : vector<16x4xf32> to vector<16x1xf32>
    %11 = arith.addf %9, %10 : vector<16x1xf32>
    %12 = vector.extract_strided_slice %8 {offsets = [16, 0], sizes = [16, 1], strides = [1, 1]} : vector<64x8xf32> to vector<16x1xf32>
    %13 = vector.extract_strided_slice %1 {offsets = [0, 1], sizes = [16, 1], strides = [1, 1]} : vector<16x4xf32> to vector<16x1xf32>
    %14 = arith.addf %12, %13 : vector<16x1xf32>
    %15 = vector.extract_strided_slice %8 {offsets = [32, 0], sizes = [16, 1], strides = [1, 1]} : vector<64x8xf32> to vector<16x1xf32>
    %16 = vector.extract_strided_slice %1 {offsets = [0, 2], sizes = [16, 1], strides = [1, 1]} : vector<16x4xf32> to vector<16x1xf32>
    %17 = arith.addf %15, %16 : vector<16x1xf32>
    %18 = vector.extract_strided_slice %8 {offsets = [48, 0], sizes = [16, 1], strides = [1, 1]} : vector<64x8xf32> to vector<16x1xf32>
    %19 = vector.extract_strided_slice %1 {offsets = [0, 3], sizes = [16, 1], strides = [1, 1]} : vector<16x4xf32> to vector<16x1xf32>
    %20 = arith.addf %18, %19 : vector<16x1xf32>
    %21 = arith.maximumf %11, %14 : vector<16x1xf32>
    %22 = arith.maximumf %17, %20 : vector<16x1xf32>
    %23 = arith.maximumf %21, %22 : vector<16x1xf32>
    %24 = arith.subf %11, %23 : vector<16x1xf32>
    %25 = math.exp %24 : vector<16x1xf32>
    %26 = arith.subf %14, %23 : vector<16x1xf32>
    %27 = math.exp %26 : vector<16x1xf32>
    %28 = arith.subf %17, %23 : vector<16x1xf32>
    %29 = math.exp %28 : vector<16x1xf32>
    %30 = arith.subf %20, %23 : vector<16x1xf32>
    %31 = math.exp %30 : vector<16x1xf32>
    %32 = arith.addf %25, %27 : vector<16x1xf32>
    %33 = arith.addf %32, %29 : vector<16x1xf32>
    %34 = arith.addf %33, %31 : vector<16x1xf32>
    %35 = tpu.reciprocal %34 {approx = true} : vector<16x1xf32> -> vector<16x1xf32>
    %36 = vector.extract_strided_slice %0 {offsets = [0, 0, 0], sizes = [1, 16, 128], strides = [1, 1, 1]} : vector<4x16x128xbf16> to vector<1x16x128xbf16>
    %37 = vector.shape_cast %36 : vector<1x16x128xbf16> to vector<16x128xbf16>
    %38 = arith.extf %37 : vector<16x128xbf16> to vector<16x128xf32>
    %39 = vector.broadcast %25 : vector<16x1xf32> to vector<16x128xf32>
    %40 = arith.mulf %39, %38 : vector<16x128xf32>
    %41 = vector.extract_strided_slice %0 {offsets = [1, 0, 0], sizes = [1, 16, 128], strides = [1, 1, 1]} : vector<4x16x128xbf16> to vector<1x16x128xbf16>
    %42 = vector.shape_cast %41 : vector<1x16x128xbf16> to vector<16x128xbf16>
    %43 = arith.extf %42 : vector<16x128xbf16> to vector<16x128xf32>
    %44 = vector.broadcast %27 : vector<16x1xf32> to vector<16x128xf32>
    %45 = arith.mulf %44, %43 : vector<16x128xf32>
    %46 = arith.addf %40, %45 : vector<16x128xf32>
    %47 = vector.extract_strided_slice %0 {offsets = [2, 0, 0], sizes = [1, 16, 128], strides = [1, 1, 1]} : vector<4x16x128xbf16> to vector<1x16x128xbf16>
    %48 = vector.shape_cast %47 : vector<1x16x128xbf16> to vector<16x128xbf16>
    %49 = arith.extf %48 : vector<16x128xbf16> to vector<16x128xf32>
    %50 = vector.broadcast %29 : vector<16x1xf32> to vector<16x128xf32>
    %51 = arith.mulf %50, %49 : vector<16x128xf32>
    %52 = arith.addf %46, %51 : vector<16x128xf32>
    %53 = vector.extract_strided_slice %0 {offsets = [3, 0, 0], sizes = [1, 16, 128], strides = [1, 1, 1]} : vector<4x16x128xbf16> to vector<1x16x128xbf16>
    %54 = vector.shape_cast %53 : vector<1x16x128xbf16> to vector<16x128xbf16>
    %55 = arith.extf %54 : vector<16x128xbf16> to vector<16x128xf32>
    %56 = vector.broadcast %31 : vector<16x1xf32> to vector<16x128xf32>
    %57 = arith.mulf %56, %55 : vector<16x128xf32>
    %58 = arith.addf %52, %57 : vector<16x128xf32>
    %59 = vector.broadcast %35 : vector<16x1xf32> to vector<16x128xf32>
    %60 = arith.mulf %58, %59 : vector<16x128xf32>
    %61 = arith.truncf %60 : vector<16x128xf32> to vector<16x128xbf16>
    %c0_9 = arith.constant 0 : index
    %c0_10 = arith.constant 0 : index
    %62 = vector.load %arg5[%c0_9, %c0_10] : memref<128x128xbf16, #tpu.memory_space<vmem>>, vector<128x128xbf16>
    %cst_11 = arith.constant dense<0.000000e+00> : vector<16x128xf32>
    %63 = tpu.matmul %61, %62, %cst_11 {dimension_numbers = #tpu.dot_dimension_numbers<[1], [0], [0], [1], [0, 0, 1, 1], [], []>} : vector<16x128xbf16>, vector<128x128xbf16>, vector<16x128xf32> -> vector<16x128xf32>
    %c0_12 = arith.constant 0 : index
    %c0_13 = arith.constant 0 : index
    %64 = vector.load %arg6[%c0_12, %c0_13] : memref<1x128xf32, #tpu.memory_space<vmem>>, vector<1x128xf32>
    %65 = vector.broadcast %64 : vector<1x128xf32> to vector<16x128xf32>
    %66 = arith.addf %63, %65 : vector<16x128xf32>
    %cst_14 = arith.constant 5.000000e-01 : f32
    %67 = vector.broadcast %cst_14 : f32 to vector<16x128xf32>
    %68 = arith.mulf %67, %66 : vector<16x128xf32>
    %cst_15 = arith.constant 0.797884583 : f32
    %69 = vector.broadcast %cst_15 : f32 to vector<16x128xf32>
    %70 = arith.mulf %66, %69 : vector<16x128xf32>
    %cst_16 = arith.constant 4.471500e-02 : f32
    %71 = vector.broadcast %cst_16 : f32 to vector<16x128xf32>
    %72 = arith.mulf %71, %66 : vector<16x128xf32>
    %73 = arith.mulf %72, %66 : vector<16x128xf32>
    %cst_17 = arith.constant 1.000000e+00 : f32
    %74 = vector.broadcast %cst_17 : f32 to vector<16x128xf32>
    %75 = arith.addf %74, %73 : vector<16x128xf32>
    %76 = arith.mulf %70, %75 : vector<16x128xf32>
    %77 = math.tanh %76 : vector<16x128xf32>
    %cst_18 = arith.constant 1.000000e+00 : f32
    %78 = vector.broadcast %cst_18 : f32 to vector<16x128xf32>
    %79 = arith.addf %78, %77 : vector<16x128xf32>
    %80 = arith.mulf %68, %79 : vector<16x128xf32>
    %81 = arith.truncf %80 : vector<16x128xf32> to vector<16x128xbf16>
    %c0_19 = arith.constant 0 : index
    %c0_20 = arith.constant 0 : index
    %82 = vector.load %arg7[%c0_19, %c0_20] : memref<128x128xbf16, #tpu.memory_space<vmem>>, vector<128x128xbf16>
    %cst_21 = arith.constant dense<0.000000e+00> : vector<16x128xf32>
    %83 = tpu.matmul %81, %82, %cst_21 {dimension_numbers = #tpu.dot_dimension_numbers<[1], [0], [0], [1], [0, 0, 1, 1], [], []>} : vector<16x128xbf16>, vector<128x128xbf16>, vector<16x128xf32> -> vector<16x128xf32>
    %c0_22 = arith.constant 0 : index
    %c0_23 = arith.constant 0 : index
    %84 = vector.load %arg8[%c0_22, %c0_23] : memref<1x128xf32, #tpu.memory_space<vmem>>, vector<1x128xf32>
    %85 = vector.broadcast %84 : vector<1x128xf32> to vector<16x128xf32>
    %86 = arith.addf %83, %85 : vector<16x128xf32>
    %87 = arith.truncf %86 : vector<16x128xf32> to vector<16x128xbf16>
    %c0_24 = arith.constant 0 : index
    %c0_25 = arith.constant 0 : index
    %88 = vector.load %arg9[%c0_24, %c0_25] : memref<128x512xbf16, #tpu.memory_space<vmem>>, vector<128x512xbf16>
    %cst_26 = arith.constant dense<0.000000e+00> : vector<16x512xf32>
    %89 = tpu.matmul %87, %88, %cst_26 {dimension_numbers = #tpu.dot_dimension_numbers<[1], [0], [0], [1], [0, 0, 1, 1], [], []>} : vector<16x128xbf16>, vector<128x512xbf16>, vector<16x512xf32> -> vector<16x512xf32>
    %c0_27 = arith.constant 0 : index
    %c0_28 = arith.constant 0 : index
    %90 = vector.load %arg10[%c0_27, %c0_28] : memref<1x512xf32, #tpu.memory_space<vmem>>, vector<1x512xf32>
    %91 = vector.broadcast %90 : vector<1x512xf32> to vector<16x512xf32>
    %92 = arith.addf %89, %91 : vector<16x512xf32>
    %cst_29 = arith.constant 5.000000e-01 : f32
    %93 = vector.broadcast %cst_29 : f32 to vector<16x512xf32>
    %94 = arith.mulf %93, %92 : vector<16x512xf32>
    %cst_30 = arith.constant 0.797884583 : f32
    %95 = vector.broadcast %cst_30 : f32 to vector<16x512xf32>
    %96 = arith.mulf %92, %95 : vector<16x512xf32>
    %cst_31 = arith.constant 4.471500e-02 : f32
    %97 = vector.broadcast %cst_31 : f32 to vector<16x512xf32>
    %98 = arith.mulf %97, %92 : vector<16x512xf32>
    %99 = arith.mulf %98, %92 : vector<16x512xf32>
    %cst_32 = arith.constant 1.000000e+00 : f32
    %100 = vector.broadcast %cst_32 : f32 to vector<16x512xf32>
    %101 = arith.addf %100, %99 : vector<16x512xf32>
    %102 = arith.mulf %96, %101 : vector<16x512xf32>
    %103 = math.tanh %102 : vector<16x512xf32>
    %cst_33 = arith.constant 1.000000e+00 : f32
    %104 = vector.broadcast %cst_33 : f32 to vector<16x512xf32>
    %105 = arith.addf %104, %103 : vector<16x512xf32>
    %106 = arith.mulf %94, %105 : vector<16x512xf32>
    %107 = arith.truncf %106 : vector<16x512xf32> to vector<16x512xbf16>
    %c0_34 = arith.constant 0 : index
    %c0_35 = arith.constant 0 : index
    %108 = vector.load %arg11[%c0_34, %c0_35] : memref<512x8xbf16, #tpu.memory_space<vmem>>, vector<512x8xbf16>
    %cst_36 = arith.constant dense<0.000000e+00> : vector<16x8xf32>
    %109 = tpu.matmul %107, %108, %cst_36 {dimension_numbers = #tpu.dot_dimension_numbers<[1], [0], [0], [1], [0, 0, 1, 1], [], []>} : vector<16x512xbf16>, vector<512x8xbf16>, vector<16x8xf32> -> vector<16x8xf32>
    %c0_37 = arith.constant 0 : index
    %c0_38 = arith.constant 0 : index
    %110 = vector.load %arg12[%c0_37, %c0_38] : memref<1x8xf32, #tpu.memory_space<vmem>>, vector<1x8xf32>
    %111 = vector.broadcast %110 : vector<1x8xf32> to vector<16x8xf32>
    %112 = arith.addf %109, %111 : vector<16x8xf32>
    %c0_39 = arith.constant 0 : index
    %c0_40 = arith.constant 0 : index
    %113 = vector.load %arg13[%c0_39, %c0_40] : memref<16x8xf32, #tpu.memory_space<vmem>>, vector<16x8xf32>
    tpu.vector_store %arg13[%c0_39, %c0_40], %112 {strides = array<i32>} : memref<16x8xf32, #tpu.memory_space<vmem>>, vector<16x8xf32>,
    return
  }
  func.func @transform_0(%arg0: i32) -> (i32, i32, i32) {
    %c0_i32 = arith.constant 0 : i32
    %c0_i32_0 = arith.constant 0 : i32
    %c0_i32_1 = arith.constant 0 : i32
    return %c0_i32, %arg0, %c0_i32_0 : i32, i32, i32
  }
  func.func @transform_1(%arg0: i32) -> (i32, i32) {
    %c0_i32 = arith.constant 0 : i32
    %c0_i32_0 = arith.constant 0 : i32
    return %arg0, %c0_i32 : i32, i32
  }
  func.func @transform_2(%arg0: i32) -> (i32, i32) {
    %c0_i32 = arith.constant 0 : i32
    %c0_i32_0 = arith.constant 0 : i32
    %c0_i32_1 = arith.constant 0 : i32
    return %c0_i32, %c0_i32_0 : i32, i32
  }
  func.func @transform_3(%arg0: i32) -> (i32, i32) {
    %c0_i32 = arith.constant 0 : i32
    %c0_i32_0 = arith.constant 0 : i32
    %c0_i32_1 = arith.constant 0 : i32
    return %c0_i32, %c0_i32_0 : i32, i32
  }
  func.func @transform_4(%arg0: i32) -> (i32, i32) {
    %c0_i32 = arith.constant 0 : i32
    %c0_i32_0 = arith.constant 0 : i32
    %c0_i32_1 = arith.constant 0 : i32
    return %c0_i32, %c0_i32_0 : i32, i32
  }
  func.func @transform_5(%arg0: i32) -> (i32, i32) {
    %c0_i32 = arith.constant 0 : i32
    %c0_i32_0 = arith.constant 0 : i32
    %c0_i32_1 = arith.constant 0 : i32
    return %c0_i32, %c0_i32_0 : i32, i32
  }
  func.func @transform_6(%arg0: i32) -> (i32, i32) {
    %c0_i32 = arith.constant 0 : i32
    %c0_i32_0 = arith.constant 0 : i32
    %c0_i32_1 = arith.constant 0 : i32
    return %c0_i32, %c0_i32_0 : i32, i32
  }
  func.func @transform_7(%arg0: i32) -> (i32, i32) {
    %c0_i32 = arith.constant 0 : i32
    %c0_i32_0 = arith.constant 0 : i32
    %c0_i32_1 = arith.constant 0 : i32
    return %c0_i32, %c0_i32_0 : i32, i32
  }
  func.func @transform_8(%arg0: i32) -> (i32, i32) {
    %c0_i32 = arith.constant 0 : i32
    %c0_i32_0 = arith.constant 0 : i32
    %c0_i32_1 = arith.constant 0 : i32
    return %c0_i32, %c0_i32_0 : i32, i32
  }
  func.func @transform_9(%arg0: i32) -> (i32, i32) {
    %c0_i32 = arith.constant 0 : i32
    %c0_i32_0 = arith.constant 0 : i32
    %c0_i32_1 = arith.constant 0 : i32
    return %c0_i32, %c0_i32_0 : i32, i32
  }
  func.func @transform_10(%arg0: i32) -> (i32, i32) {
    %c0_i32 = arith.constant 0 : i32
    %c0_i32_0 = arith.constant 0 : i32
    %c0_i32_1 = arith.constant 0 : i32
    return %c0_i32, %c0_i32_0 : i32, i32
  }
  func.func @transform_11(%arg0: i32) -> (i32, i32) {
    %c0_i32 = arith.constant 0 : i32
    %c0_i32_0 = arith.constant 0 : i32
    %c0_i32_1 = arith.constant 0 : i32
    return %c0_i32, %c0_i32_0 : i32, i32
  }
  func.func @transform_12(%arg0: i32) -> (i32, i32) {
    %c0_i32 = arith.constant 0 : i32
    %c0_i32_0 = arith.constant 0 : i32
    return %arg0, %c0_i32 : i32, i32
  }
}

</mosaic_0001>

<llo_original>
// kernel: tpu_custom_call.1
$region0: #{tpu_custom_call.1}
  #allocation0 [shape = 'u32[]', space=smem, size = 0x4, offset = 0x4, fixed_abs, tag = 'smem constant byte address 0x4 - core index']
  #allocation1 [shape = 'u32[144,128]{1,0:T(1,128)}', space=vmem, size = 0x12000, scoped, tag = 'internal scratch']
  %s0 = inlined_call_operand.hbm [shape: bf16[4,16,128], index: 0, kind: input, shape index: {}]
  %s1 = inlined_call_operand.vmem [shape: f32[16,4], index: 1, kind: input, shape index: {}]
  %s2 = inlined_call_operand.vmem [shape: bf16[128,128], index: 2, kind: input, shape index: {}]
  %s3 = inlined_call_operand.vmem [shape: bf16[128,8], index: 3, kind: input, shape index: {}]
  %s4 = inlined_call_operand.vmem [shape: bf16[128,128], index: 4, kind: input, shape index: {}]
  %s5 = inlined_call_operand.vmem [shape: f32[1,128], index: 5, kind: input, shape index: {}]
  %s6 = inlined_call_operand.hbm [shape: bf16[128,128], index: 6, kind: input, shape index: {}]
  %s7 = inlined_call_operand.vmem [shape: f32[1,128], index: 7, kind: input, shape index: {}]
  %s8 = inlined_call_operand.vmem [shape: bf16[128,512], index: 8, kind: input, shape index: {}]
  %s9 = inlined_call_operand.vmem [shape: f32[1,512], index: 9, kind: input, shape index: {}]
  %s10 = inlined_call_operand.vmem [shape: bf16[512,8], index: 10, kind: input, shape index: {}]
  %s11 = inlined_call_operand.vmem [shape: f32[1,8], index: 11, kind: input, shape index: {}]
  %s12 = inlined_call_operand.vmem [shape: f32[16,8], index: 12, kind: output, shape index: {}]
  %s13 = sld [smem:[#allocation0]]
  $region66: #{tpu_custom_call.1} parent=0
    _
  %s15 = ssub.s32 1, %s13
  %s16 = scalar_select 0, %s15, %s13
  $region1: #{tpu_custom_call.1} parent=0
    #allocation2 [shape = 'u8[16384]{0}', space=vmem, size = 0x4000, scoped, tag = 'input window, operand 0, single buffered']
    #allocation3 [shape = 's32[1]{0}', space=sflag, size = 0x4, scoped, tag = 'scoped memory for tpu_custom_call.1']
    #allocation4 [shape = 'u8[32768]{0}', space=vmem, size = 0x8000, scoped, tag = 'input window, operand 6, single buffered']
    #allocation5 [shape = 's32[1]{0}', space=sflag, size = 0x4, scoped, tag = 'scoped memory for tpu_custom_call.1']
    %17 = vsyncpa [#allocation3], 0
    %18 = vsyncpa [#allocation5], 0
    // Predicated region
    $region2: #{tpu_custom_call.1} parent=1 // pred_check
      _
    $region3: #{tpu_custom_call.1} parent=1 // pred_check_branch
      %20 = sbr.rel (0) target = $region5
    $region4: #{tpu_custom_call.1} parent=1 // pred_region
      %s22 = ssub.s32 512, 512
      %23 = vsyncadd [#allocation3], %s22
      %s24 = sshll.u32 [#allocation2], 4
      %s25 = int_to_ptr.vmem [resolvable:$true] %s24
      %30 = dma.hbm_to_vmem [thread:$0]  %s0, 512, %s25, [#allocation3], 64, 64, 4
    $region5: #{tpu_custom_call.1} parent=1 // pred_fallthru
      _
    // Predicated region
    $region6: #{tpu_custom_call.1} parent=1 // pred_check
      _
    $region7: #{tpu_custom_call.1} parent=1 // pred_check_branch
      %32 = sbr.rel (0) target = $region9
    $region8: #{tpu_custom_call.1} parent=1 // pred_region
      _
    $region9: #{tpu_custom_call.1} parent=1 // pred_fallthru
      _
    // Predicated region
    $region10: #{tpu_custom_call.1} parent=1 // pred_check
      _
    $region11: #{tpu_custom_call.1} parent=1 // pred_check_branch
      %34 = sbr.rel (0) target = $region13
    $region12: #{tpu_custom_call.1} parent=1 // pred_region
      _
    $region13: #{tpu_custom_call.1} parent=1 // pred_fallthru
      _
    // Predicated region
    $region14: #{tpu_custom_call.1} parent=1 // pred_check
      _
    $region15: #{tpu_custom_call.1} parent=1 // pred_check_branch
      %36 = sbr.rel (0) target = $region17
    $region16: #{tpu_custom_call.1} parent=1 // pred_region
      _
    $region17: #{tpu_custom_call.1} parent=1 // pred_fallthru
      _
    // Predicated region
    $region18: #{tpu_custom_call.1} parent=1 // pred_check
      _
    $region19: #{tpu_custom_call.1} parent=1 // pred_check_branch
      %38 = sbr.rel (0) target = $region21
    $region20: #{tpu_custom_call.1} parent=1 // pred_region
      _
    $region21: #{tpu_custom_call.1} parent=1 // pred_fallthru
      _
    // Predicated region
    $region22: #{tpu_custom_call.1} parent=1 // pred_check
      _
    $region23: #{tpu_custom_call.1} parent=1 // pred_check_branch
      %40 = sbr.rel (0) target = $region25
    $region24: #{tpu_custom_call.1} parent=1 // pred_region
      _
    $region25: #{tpu_custom_call.1} parent=1 // pred_fallthru
      _
    // Predicated region
    $region26: #{tpu_custom_call.1} parent=1 // pred_check
      _
    $region27: #{tpu_custom_call.1} parent=1 // pred_check_branch
      %42 = sbr.rel (0) target = $region29
    $region28: #{tpu_custom_call.1} parent=1 // pred_region
      %s44 = ssub.s32 1024, 1024
      %45 = vsyncadd [#allocation5], %s44
      %s46 = sshll.u32 [#allocation4], 4
      %s47 = int_to_ptr.vmem [resolvable:$true] %s46
      %52 = dma.hbm_to_vmem [thread:$0]  %s6, 1024, %s47, [#allocation5], 64, 64, 4
    $region29: #{tpu_custom_call.1} parent=1 // pred_fallthru
      _
    // Predicated region
    $region30: #{tpu_custom_call.1} parent=1 // pred_check
      _
    $region31: #{tpu_custom_call.1} parent=1 // pred_check_branch
      %54 = sbr.rel (0) target = $region33
    $region32: #{tpu_custom_call.1} parent=1 // pred_region
      _
    $region33: #{tpu_custom_call.1} parent=1 // pred_fallthru
      _
    // Predicated region
    $region34: #{tpu_custom_call.1} parent=1 // pred_check
      _
    $region35: #{tpu_custom_call.1} parent=1 // pred_check_branch
      %56 = sbr.rel (0) target = $region37
    $region36: #{tpu_custom_call.1} parent=1 // pred_region
      _
    $region37: #{tpu_custom_call.1} parent=1 // pred_fallthru
      _
    // Predicated region
    $region38: #{tpu_custom_call.1} parent=1 // pred_check
      _
    $region39: #{tpu_custom_call.1} parent=1 // pred_check_branch
      %58 = sbr.rel (0) target = $region41
    $region40: #{tpu_custom_call.1} parent=1 // pred_region
      _
    $region41: #{tpu_custom_call.1} parent=1 // pred_fallthru
      _
    // Predicated region
    $region42: #{tpu_custom_call.1} parent=1 // pred_check
      _
    $region43: #{tpu_custom_call.1} parent=1 // pred_check_branch
      %60 = sbr.rel (0) target = $region45
    $region44: #{tpu_custom_call.1} parent=1 // pred_region
      _
    $region45: #{tpu_custom_call.1} parent=1 // pred_fallthru
      _
    // Predicated region
    $region46: #{tpu_custom_call.1} parent=1 // pred_check
      _
    $region47: #{tpu_custom_call.1} parent=1 // pred_check_branch
      %62 = sbr.rel (0) target = $region49
    $region48: #{tpu_custom_call.1} parent=1 // pred_region
      _
    $region49: #{tpu_custom_call.1} parent=1 // pred_fallthru
      _
    // Predicated region
    $region50: #{tpu_custom_call.1} parent=1 // pred_check
      _
    $region51: #{tpu_custom_call.1} parent=1 // pred_check_branch
      %64 = sbr.rel (0) target = $region53
    $region52: #{tpu_custom_call.1} parent=1 // pred_region
      %65 = dma.done [#allocation3], 512
    $region53: #{tpu_custom_call.1} parent=1 // pred_fallthru
      _
    // Predicated region
    $region54: #{tpu_custom_call.1} parent=1 // pred_check
      _
    $region55: #{tpu_custom_call.1} parent=1 // pred_check_branch
      %67 = sbr.rel (0) target = $region57
    $region56: #{tpu_custom_call.1} parent=1 // pred_region
      %68 = dma.done [#allocation5], 1024
    $region57: #{tpu_custom_call.1} parent=1 // pred_fallthru
      _
    %v70 = vld [vmem:[#allocation2] sm:$0xf]
    %v71 = vld [vmem:[#allocation2 + $0x4] sm:$0xf]
    %v72 = vld [vmem:[#allocation2 + $0x8] sm:$0xf]
    %v73 = vld [vmem:[#allocation2 + $0xc] sm:$0xf]
    %v74 = vld [vmem:[#allocation2 + $0x10] sm:$0xf]
    %v75 = vld [vmem:[#allocation2 + $0x14] sm:$0xf]
    %v76 = vld [vmem:[#allocation2 + $0x18] sm:$0xf]
    %v77 = vld [vmem:[#allocation2 + $0x1c] sm:$0xf]
    %v78 = vld [vmem:[%s1] sm:$0xff]
    %v79 = vld [vmem:[%s1 + $0x8] sm:$0xff]
    %v80 = vld [vmem:[%s2] sm:$0xf]
    %v81 = vld [vmem:[%s2 + $0x4] sm:$0xf]
    %v82 = vld [vmem:[%s2 + $0x8] sm:$0xf]
    %v83 = vld [vmem:[%s2 + $0xc] sm:$0xf]
    %v84 = vld [vmem:[%s2 + $0x10] sm:$0xf]
    %v85 = vld [vmem:[%s2 + $0x14] sm:$0xf]
    %v86 = vld [vmem:[%s2 + $0x18] sm:$0xf]
    %v87 = vld [vmem:[%s2 + $0x1c] sm:$0xf]
    %v88 = vld [vmem:[%s2 + $0x20] sm:$0xf]
    %v89 = vld [vmem:[%s2 + $0x24] sm:$0xf]
    %v90 = vld [vmem:[%s2 + $0x28] sm:$0xf]
    %v91 = vld [vmem:[%s2 + $0x2c] sm:$0xf]
    %v92 = vld [vmem:[%s2 + $0x30] sm:$0xf]
    %v93 = vld [vmem:[%s2 + $0x34] sm:$0xf]
    %v94 = vld [vmem:[%s2 + $0x38] sm:$0xf]
    %v95 = vld [vmem:[%s2 + $0x3c] sm:$0xf]
    %v104 = vunpack.c.l.b16 %v70
    %v105 = vunpack.c.l.b16 %v71
    %v106 = vunpack.c.l.b16 %v72
    %v107 = vunpack.c.l.b16 %v73
    %v108 = vunpack.c.l.b16 %v74
    %v109 = vunpack.c.l.b16 %v75
    %v110 = vunpack.c.l.b16 %v76
    %v111 = vunpack.c.l.b16 %v77
    %v112 = vpack.c.b16 %v105, %v104
    %v113 = vpack.c.b16 %v107, %v106
    %v114 = vpack.c.b16 %v109, %v108
    %v115 = vpack.c.b16 %v111, %v110
    %v136 = vunpack.c.l.b16 %v80
    %v137 = vunpack.c.l.b16 %v81
    %v138 = vunpack.c.l.b16 %v82
    %v139 = vunpack.c.l.b16 %v83
    %v140 = vunpack.c.l.b16 %v84
    %v141 = vunpack.c.l.b16 %v85
    %v142 = vunpack.c.l.b16 %v86
    %v143 = vunpack.c.l.b16 %v87
    %v144 = vunpack.c.l.b16 %v88
    %v145 = vunpack.c.l.b16 %v89
    %v146 = vunpack.c.l.b16 %v90
    %v147 = vunpack.c.l.b16 %v91
    %v148 = vunpack.c.l.b16 %v92
    %v149 = vunpack.c.l.b16 %v93
    %v150 = vunpack.c.l.b16 %v94
    %v151 = vunpack.c.l.b16 %v95
    %v152 = vpack.c.b16 %v137, %v136
    %v153 = vpack.c.b16 %v139, %v138
    %v154 = vpack.c.b16 %v141, %v140
    %v155 = vpack.c.b16 %v143, %v142
    %v156 = vpack.c.b16 %v145, %v144
    %v157 = vpack.c.b16 %v147, %v146
    %v158 = vpack.c.b16 %v149, %v148
    %v159 = vpack.c.b16 %v151, %v150
    %168 = vmatprep.subr.bf16.mxu0 0
    %169 = vmatpush1.bf16.msra.mxu0 %v152
    %170 = vmatprep.subr.bf16.mxu0 0
    %171 = vmatpush1.bf16.msra.mxu0 %v153
    %172 = vmatprep.subr.bf16.mxu0 0
    %173 = vmatpush1.bf16.msra.mxu0 %v154
    %174 = vmatprep.subr.bf16.mxu0 0
    %175 = vmatpush1.bf16.msra.mxu0 %v155
    %176 = vmatprep.subr.bf16.mxu0 0
    %177 = vmatpush1.bf16.msra.mxu0 %v156
    %178 = vmatprep.subr.bf16.mxu0 0
    %179 = vmatpush1.bf16.msra.mxu0 %v157
    %180 = vmatprep.subr.bf16.mxu0 0
    %181 = vmatpush1.bf16.msra.mxu0 %v158
    %182 = vmatprep.subr.bf16.mxu0 0
    %183 = vmatpush1.bf16.msra.mxu0 %v159
    %184 = vmatprep.subr.bf16.mxu0 0
    %185 = vmatpush1.bf16.msra.mxu0 0
    %186 = vmatprep.subr.bf16.mxu0 0
    %187 = vmatpush1.bf16.msra.mxu0 0
    %188 = vmatprep.subr.bf16.mxu0 0
    %189 = vmatpush1.bf16.msra.mxu0 0
    %190 = vmatprep.subr.bf16.mxu0 0
    %191 = vmatpush1.bf16.msra.mxu0 0
    %192 = vmatprep.subr.bf16.mxu0 0
    %193 = vmatpush1.bf16.msra.mxu0 0
    %194 = vmatprep.subr.bf16.mxu0 0
    %195 = vmatpush1.bf16.msra.mxu0 0
    %196 = vmatprep.subr.bf16.mxu0 0
    %197 = vmatpush1.bf16.msra.mxu0 0
    %198 = vmatprep.subr.bf16.mxu0 0
    %199 = vmatpush1.bf16.msra.mxu0 0
    %200 = vmatprep.mubr.bf16.mxu0 0
    %201 = vmatmul.mubr.bf16.gmra.mrb[0].mxu0 %v112
    %v202 = vpop.f32.mrb[0].mxu0
    %v203 = vadd.f32 0.0, %v202
    %v204 = vpop.f32.mrb[0].mxu0
    %v205 = vpop.f32.mrb[0].mxu0
    %v206 = vadd.f32 0.0, %v205
    %v207 = vpop.f32.mrb[0].mxu0
    %208 = vmatprep.mubr.bf16.mxu0 0
    %209 = vmatmul.mubr.bf16.gmra.mrb[0].mxu0 %v113
    %v210 = vpop.f32.mrb[0].mxu0
    %v211 = vadd.f32 0.0, %v210
    %v212 = vpop.f32.mrb[0].mxu0
    %v213 = vpop.f32.mrb[0].mxu0
    %v214 = vadd.f32 0.0, %v213
    %v215 = vpop.f32.mrb[0].mxu0
    %216 = vmatprep.mubr.bf16.mxu0 0
    %217 = vmatmul.mubr.bf16.gmra.mrb[0].mxu0 %v114
    %v218 = vpop.f32.mrb[0].mxu0
    %v219 = vadd.f32 0.0, %v218
    %v220 = vpop.f32.mrb[0].mxu0
    %v221 = vpop.f32.mrb[0].mxu0
    %v222 = vadd.f32 0.0, %v221
    %v223 = vpop.f32.mrb[0].mxu0
    %224 = vmatprep.mubr.bf16.mxu0 0
    %225 = vmatmul.mubr.bf16.gmra.mrb[0].mxu0 %v115
    %v226 = vpop.f32.mrb[0].mxu0
    %v227 = vadd.f32 0.0, %v226
    %v228 = vpop.f32.mrb[0].mxu0
    %v229 = vpop.f32.mrb[0].mxu0
    %v230 = vadd.f32 0.0, %v229
    %v231 = vpop.f32.mrb[0].mxu0
    %232 = vdwg.mxu0
    %v233 = vtanh.pop %v203
    %v234 = vtanh.pop %v206
    %v235 = vtanh.pop %v211
    %v236 = vtanh.pop %v214
    %v237 = vtanh.pop %v219
    %v238 = vtanh.pop %v222
    %v239 = vtanh.pop %v227
    %v240 = vtanh.pop %v230
    %v241 = vpack.c.bf16 %v234, %v233
    %v242 = vpack.c.bf16 %v236, %v235
    %v243 = vpack.c.bf16 %v238, %v237
    %v244 = vpack.c.bf16 %v240, %v239
    %v245 = vld [vmem:[%s3] sm:$0xf]
    %v246 = vld [vmem:[%s3 + $0x4] sm:$0xf]
    %v247 = vld [vmem:[%s3 + $0x8] sm:$0xf]
    %v248 = vld [vmem:[%s3 + $0xc] sm:$0xf]
    %v249 = vld [vmem:[%s3 + $0x10] sm:$0xf]
    %v250 = vld [vmem:[%s3 + $0x14] sm:$0xf]
    %v251 = vld [vmem:[%s3 + $0x18] sm:$0xf]
    %v252 = vld [vmem:[%s3 + $0x1c] sm:$0xf]
    %v253 = vld [vmem:[%s3 + $0x20] sm:$0xf]
    %v254 = vld [vmem:[%s3 + $0x24] sm:$0xf]
    %v255 = vld [vmem:[%s3 + $0x28] sm:$0xf]
    %v256 = vld [vmem:[%s3 + $0x2c] sm:$0xf]
    %v257 = vld [vmem:[%s3 + $0x30] sm:$0xf]
    %v258 = vld [vmem:[%s3 + $0x34] sm:$0xf]
    %v259 = vld [vmem:[%s3 + $0x38] sm:$0xf]
    %v260 = vld [vmem:[%s3 + $0x3c] sm:$0xf]
    %v277 = vunpack.c.l.b16 %v245
    %v278 = vunpack.c.l.b16 %v246
    %v279 = vunpack.c.l.b16 %v247
    %v280 = vunpack.c.l.b16 %v248
    %v281 = vunpack.c.l.b16 %v249
    %v282 = vunpack.c.l.b16 %v250
    %v283 = vunpack.c.l.b16 %v251
    %v284 = vunpack.c.l.b16 %v252
    %v285 = vunpack.c.l.b16 %v253
    %v286 = vunpack.c.l.b16 %v254
    %v287 = vunpack.c.l.b16 %v255
    %v288 = vunpack.c.l.b16 %v256
    %v289 = vunpack.c.l.b16 %v257
    %v290 = vunpack.c.l.b16 %v258
    %v291 = vunpack.c.l.b16 %v259
    %v292 = vunpack.c.l.b16 %v260
    %v293 = vpack.c.b16 %v278, %v277
    %v294 = vpack.c.b16 %v280, %v279
    %v295 = vpack.c.b16 %v282, %v281
    %v296 = vpack.c.b16 %v284, %v283
    %v297 = vpack.c.b16 %v286, %v285
    %v298 = vpack.c.b16 %v288, %v287
    %v299 = vpack.c.b16 %v290, %v289
    %v300 = vpack.c.b16 %v292, %v291
    %309 = vmatprep.subr.bf16.mxu0 0
    %310 = vmatpush1.bf16.msra.mxu0 %v293
    %311 = vmatprep.subr.bf16.mxu0 0
    %312 = vmatpush1.bf16.msra.mxu0 %v294
    %313 = vmatprep.subr.bf16.mxu0 0
    %314 = vmatpush1.bf16.msra.mxu0 %v295
    %315 = vmatprep.subr.bf16.mxu0 0
    %316 = vmatpush1.bf16.msra.mxu0 %v296
    %317 = vmatprep.subr.bf16.mxu0 0
    %318 = vmatpush1.bf16.msra.mxu0 %v297
    %319 = vmatprep.subr.bf16.mxu0 0
    %320 = vmatpush1.bf16.msra.mxu0 %v298
    %321 = vmatprep.subr.bf16.mxu0 0
    %322 = vmatpush1.bf16.msra.mxu0 %v299
    %323 = vmatprep.subr.bf16.mxu0 0
    %324 = vmatpush1.bf16.msra.mxu0 %v300
    %325 = vmatprep.subr.bf16.mxu0 0
    %326 = vmatpush1.bf16.msra.mxu0 0
    %327 = vmatprep.subr.bf16.mxu0 0
    %328 = vmatpush1.bf16.msra.mxu0 0
    %329 = vmatprep.subr.bf16.mxu0 0
    %330 = vmatpush1.bf16.msra.mxu0 0
    %331 = vmatprep.subr.bf16.mxu0 0
    %332 = vmatpush1.bf16.msra.mxu0 0
    %333 = vmatprep.subr.bf16.mxu0 0
    %334 = vmatpush1.bf16.msra.mxu0 0
    %335 = vmatprep.subr.bf16.mxu0 0
    %336 = vmatpush1.bf16.msra.mxu0 0
    %337 = vmatprep.subr.bf16.mxu0 0
    %338 = vmatpush1.bf16.msra.mxu0 0
    %339 = vmatprep.subr.bf16.mxu0 0
    %340 = vmatpush1.bf16.msra.mxu0 0
    %341 = vmatprep.mubr.bf16.mxu0 0
    %342 = vmatmul.mubr.bf16.gmra.mrb[0].mxu0 %v241
    %v343 = vpop.f32.mrb[0].mxu0
    %v344 = vadd.f32 0.0, %v343
    %v345 = vpop.f32.mrb[0].mxu0
    %v346 = vpop.f32.mrb[0].mxu0
    %v347 = vadd.f32 0.0, %v346
    %v348 = vpop.f32.mrb[0].mxu0
    %349 = vmatprep.mubr.bf16.mxu0 0
    %350 = vmatmul.mubr.bf16.gmra.mrb[0].mxu0 %v242
    %v351 = vpop.f32.mrb[0].mxu0
    %v352 = vadd.f32 0.0, %v351
    %v353 = vpop.f32.mrb[0].mxu0
    %v354 = vpop.f32.mrb[0].mxu0
    %v355 = vadd.f32 0.0, %v354
    %v356 = vpop.f32.mrb[0].mxu0
    %357 = vmatprep.mubr.bf16.mxu0 0
    %358 = vmatmul.mubr.bf16.gmra.mrb[0].mxu0 %v243
    %v359 = vpop.f32.mrb[0].mxu0
    %v360 = vadd.f32 0.0, %v359
    %v361 = vpop.f32.mrb[0].mxu0
    %v362 = vpop.f32.mrb[0].mxu0
    %v363 = vadd.f32 0.0, %v362
    %v364 = vpop.f32.mrb[0].mxu0
    %365 = vmatprep.mubr.bf16.mxu0 0
    %366 = vmatmul.mubr.bf16.gmra.mrb[0].mxu0 %v244
    %v367 = vpop.f32.mrb[0].mxu0
    %v368 = vadd.f32 0.0, %v367
    %v369 = vpop.f32.mrb[0].mxu0
    %v370 = vpop.f32.mrb[0].mxu0
    %v371 = vadd.f32 0.0, %v370
    %v372 = vpop.f32.mrb[0].mxu0
    %373 = vdwg.mxu0
    %v374 = vadd.f32 %v344, %v78
    %v375 = vadd.f32 %v347, %v79
    %378 = vrot.lane.b32.xlu0 %v78, 127
    %v379 = vpop.permute.xlu0 %378
    %380 = vrot.lane.b32.xlu0 %v79, 127
    %v381 = vpop.permute.xlu0 %380
    %v384 = vadd.f32 %v352, %v379
    %v385 = vadd.f32 %v355, %v381
    %386 = vrot.lane.b32.xlu0 %v78, 126
    %v387 = vpop.permute.xlu0 %386
    %388 = vrot.lane.b32.xlu0 %v79, 126
    %v389 = vpop.permute.xlu0 %388
    %v392 = vadd.f32 %v360, %v387
    %v393 = vadd.f32 %v363, %v389
    %394 = vrot.lane.b32.xlu0 %v78, 125
    %v395 = vpop.permute.xlu0 %394
    %396 = vrot.lane.b32.xlu0 %v79, 125
    %v397 = vpop.permute.xlu0 %396
    %v400 = vadd.f32 %v368, %v395
    %v401 = vadd.f32 %v371, %v397
    %v402 = vmax.f32 %v374, %v384
    %v403 = vmax.f32 %v375, %v385
    %v404 = vmax.f32 %v392, %v400
    %v405 = vmax.f32 %v393, %v401
    %v406 = vmax.f32 %v402, %v404
    %v407 = vmax.f32 %v403, %v405
    %v408 = vsub.f32 %v374, %v406
    %v409 = vsub.f32 %v375, %v407
    %v410 = vmul.f32 %v408, 1.442695
    %v411 = vpow.pop %v410
    %v412 = vmul.f32 %v409, 1.442695
    %v413 = vpow.pop %v412
    %v414 = vsub.f32 %v384, %v406
    %v415 = vsub.f32 %v385, %v407
    %v416 = vmul.f32 %v414, 1.442695
    %v417 = vpow.pop %v416
    %v418 = vmul.f32 %v415, 1.442695
    %v419 = vpow.pop %v418
    %v420 = vsub.f32 %v392, %v406
    %v421 = vsub.f32 %v393, %v407
    %v422 = vmul.f32 %v420, 1.442695
    %v423 = vpow.pop %v422
    %v424 = vmul.f32 %v421, 1.442695
    %v425 = vpow.pop %v424
    %v426 = vsub.f32 %v400, %v406
    %v427 = vsub.f32 %v401, %v407
    %v428 = vmul.f32 %v426, 1.442695
    %v429 = vpow.pop %v428
    %v430 = vmul.f32 %v427, 1.442695
    %v431 = vpow.pop %v430
    %v432 = vadd.f32 %v411, %v417
    %v433 = vadd.f32 %v413, %v419
    %v434 = vadd.f32 %v432, %v423
    %v435 = vadd.f32 %v433, %v425
    %v436 = vadd.f32 %v434, %v429
    %v437 = vadd.f32 %v435, %v431
    %v438 = vrcp.pop %v436
    %v439 = vrcp.pop %v437
    %v440 = vunpack.c.l.bf16 %v70
    %v441 = vunpack.c.l.bf16 %v71
    %443 = vset.pattern.permute.xlu0 0
    %444 = vperm.xlu0 %443, %v411
    %v445 = vpop.permute.xlu0 %444
    %448 = vset.pattern.permute.xlu0 0
    %449 = vperm.xlu0 %448, %v413
    %v450 = vpop.permute.xlu0 %449
    %v452 = vmul.f32 %v445, %v440
    %v453 = vmul.f32 %v450, %v441
    %v454 = vunpack.c.l.bf16 %v72
    %v455 = vunpack.c.l.bf16 %v73
    %457 = vset.pattern.permute.xlu0 0
    %458 = vperm.xlu0 %457, %v417
    %v459 = vpop.permute.xlu0 %458
    %462 = vset.pattern.permute.xlu0 0
    %463 = vperm.xlu0 %462, %v419
    %v464 = vpop.permute.xlu0 %463
    %v466 = vmul.f32 %v459, %v454
    %v467 = vmul.f32 %v464, %v455
    %v468 = vadd.f32 %v452, %v466
    %v469 = vadd.f32 %v453, %v467
    %v470 = vunpack.c.l.bf16 %v74
    %v471 = vunpack.c.l.bf16 %v75
    %473 = vset.pattern.permute.xlu0 0
    %474 = vperm.xlu0 %473, %v423
    %v475 = vpop.permute.xlu0 %474
    %478 = vset.pattern.permute.xlu0 0
    %479 = vperm.xlu0 %478, %v425
    %v480 = vpop.permute.xlu0 %479
    %v482 = vmul.f32 %v475, %v470
    %v483 = vmul.f32 %v480, %v471
    %v484 = vadd.f32 %v468, %v482
    %v485 = vadd.f32 %v469, %v483
    %v486 = vunpack.c.l.bf16 %v76
    %v487 = vunpack.c.l.bf16 %v77
    %489 = vset.pattern.permute.xlu0 0
    %490 = vperm.xlu0 %489, %v429
    %v491 = vpop.permute.xlu0 %490
    %494 = vset.pattern.permute.xlu0 0
    %495 = vperm.xlu0 %494, %v431
    %v496 = vpop.permute.xlu0 %495
    %v498 = vmul.f32 %v491, %v486
    %v499 = vmul.f32 %v496, %v487
    %v500 = vadd.f32 %v484, %v498
    %v501 = vadd.f32 %v485, %v499
    %503 = vset.pattern.permute.xlu0 0
    %504 = vperm.xlu0 %503, %v438
    %v505 = vpop.permute.xlu0 %504
    %508 = vset.pattern.permute.xlu0 0
    %509 = vperm.xlu0 %508, %v439
    %v510 = vpop.permute.xlu0 %509
    %v512 = vmul.f32 %v500, %v505
    %v513 = vmul.f32 %v501, %v510
    %v514 = vpack.c.bf16 %v513, %v512
    %v515 = vld [vmem:[%s4] sm:$0xf]
    %v516 = vld [vmem:[%s4 + $0x4] sm:$0xf]
    %v517 = vld [vmem:[%s4 + $0x8] sm:$0xf]
    %v518 = vld [vmem:[%s4 + $0xc] sm:$0xf]
    %v519 = vld [vmem:[%s4 + $0x10] sm:$0xf]
    %v520 = vld [vmem:[%s4 + $0x14] sm:$0xf]
    %v521 = vld [vmem:[%s4 + $0x18] sm:$0xf]
    %v522 = vld [vmem:[%s4 + $0x1c] sm:$0xf]
    %v523 = vld [vmem:[%s4 + $0x20] sm:$0xf]
    %v524 = vld [vmem:[%s4 + $0x24] sm:$0xf]
    %v525 = vld [vmem:[%s4 + $0x28] sm:$0xf]
    %v526 = vld [vmem:[%s4 + $0x2c] sm:$0xf]
    %v527 = vld [vmem:[%s4 + $0x30] sm:$0xf]
    %v528 = vld [vmem:[%s4 + $0x34] sm:$0xf]
    %v529 = vld [vmem:[%s4 + $0x38] sm:$0xf]
    %v530 = vld [vmem:[%s4 + $0x3c] sm:$0xf]
    %v531 = vld [vmem:[%s5] sm:$0x1]
    %v533 = vlaneseq
    %v534 = vshrl.u32 %v533, 7
    %v535 = vsub.s32 0, %v534
    %v536 = vrot.slane %v531, %v535
    %v554 = vunpack.c.l.b16 %v515
    %v555 = vunpack.c.l.b16 %v516
    %v556 = vunpack.c.l.b16 %v517
    %v557 = vunpack.c.l.b16 %v518
    %v558 = vunpack.c.l.b16 %v519
    %v559 = vunpack.c.l.b16 %v520
    %v560 = vunpack.c.l.b16 %v521
    %v561 = vunpack.c.l.b16 %v522
    %v562 = vunpack.c.l.b16 %v523
    %v563 = vunpack.c.l.b16 %v524
    %v564 = vunpack.c.l.b16 %v525
    %v565 = vunpack.c.l.b16 %v526
    %v566 = vunpack.c.l.b16 %v527
    %v567 = vunpack.c.l.b16 %v528
    %v568 = vunpack.c.l.b16 %v529
    %v569 = vunpack.c.l.b16 %v530
    %v570 = vpack.c.b16 %v555, %v554
    %v571 = vpack.c.b16 %v557, %v556
    %v572 = vpack.c.b16 %v559, %v558
    %v573 = vpack.c.b16 %v561, %v560
    %v574 = vpack.c.b16 %v563, %v562
    %v575 = vpack.c.b16 %v565, %v564
    %v576 = vpack.c.b16 %v567, %v566
    %v577 = vpack.c.b16 %v569, %v568
    %586 = vmatprep.subr.bf16.mxu0 0
    %587 = vmatpush1.bf16.msra.mxu0 %v570
    %588 = vmatprep.subr.bf16.mxu0 0
    %589 = vmatpush1.bf16.msra.mxu0 %v571
    %590 = vmatprep.subr.bf16.mxu0 0
    %591 = vmatpush1.bf16.msra.mxu0 %v572
    %592 = vmatprep.subr.bf16.mxu0 0
    %593 = vmatpush1.bf16.msra.mxu0 %v573
    %594 = vmatprep.subr.bf16.mxu0 0
    %595 = vmatpush1.bf16.msra.mxu0 %v574
    %596 = vmatprep.subr.bf16.mxu0 0
    %597 = vmatpush1.bf16.msra.mxu0 %v575
    %598 = vmatprep.subr.bf16.mxu0 0
    %599 = vmatpush1.bf16.msra.mxu0 %v576
    %600 = vmatprep.subr.bf16.mxu0 0
    %601 = vmatpush1.bf16.msra.mxu0 %v577
    %602 = vmatprep.subr.bf16.mxu0 0
    %603 = vmatpush1.bf16.msra.mxu0 0
    %604 = vmatprep.subr.bf16.mxu0 0
    %605 = vmatpush1.bf16.msra.mxu0 0
    %606 = vmatprep.subr.bf16.mxu0 0
    %607 = vmatpush1.bf16.msra.mxu0 0
    %608 = vmatprep.subr.bf16.mxu0 0
    %609 = vmatpush1.bf16.msra.mxu0 0
    %610 = vmatprep.subr.bf16.mxu0 0
    %611 = vmatpush1.bf16.msra.mxu0 0
    %612 = vmatprep.subr.bf16.mxu0 0
    %613 = vmatpush1.bf16.msra.mxu0 0
    %614 = vmatprep.subr.bf16.mxu0 0
    %615 = vmatpush1.bf16.msra.mxu0 0
    %616 = vmatprep.subr.bf16.mxu0 0
    %617 = vmatpush1.bf16.msra.mxu0 0
    %618 = vmatprep.mubr.bf16.mxu0 0
    %619 = vmatmul.mubr.bf16.gmra.mrb[0].mxu0 %v514
    %v620 = vpop.f32.mrb[0].mxu0
    %v621 = vadd.f32 %v536, %v620
    %v622 = vpop.f32.mrb[0].mxu0
    %v623 = vpop.f32.mrb[0].mxu0
    %v624 = vadd.f32 %v536, %v623
    %v625 = vpop.f32.mrb[0].mxu0
    %626 = vdwg.mxu0
    %v627 = vmul.f32 %v621, 0.5
    %v628 = vmul.f32 %v624, 0.5
    %v629 = vmul.f32 %v621, 0.7978846
    %v630 = vmul.f32 %v624, 0.7978846
    %v631 = vmul.f32 %v621, 0.044715
    %v632 = vmul.f32 %v624, 0.044715
    %v633 = vmul.f32 %v631, %v621
    %v634 = vmul.f32 %v632, %v624
    %v635 = vadd.f32 %v633, 1.0
    %v636 = vadd.f32 %v634, 1.0
    %v637 = vmul.f32 %v629, %v635
    %v638 = vmul.f32 %v630, %v636
    %v639 = vtanh.pop %v637
    %v640 = vtanh.pop %v638
    %v641 = vadd.f32 %v639, 1.0
    %v642 = vadd.f32 %v640, 1.0
    %v643 = vmul.f32 %v627, %v641
    %v644 = vmul.f32 %v628, %v642
    %v645 = vpack.c.bf16 %v644, %v643
    %v646 = vld [vmem:[#allocation4] sm:$0xf]
    %v647 = vld [vmem:[#allocation4 + $0x4] sm:$0xf]
    %v648 = vld [vmem:[#allocation4 + $0x8] sm:$0xf]
    %v649 = vld [vmem:[#allocation4 + $0xc] sm:$0xf]
    %v650 = vld [vmem:[#allocation4 + $0x10] sm:$0xf]
    %v651 = vld [vmem:[#allocation4 + $0x14] sm:$0xf]
    %v652 = vld [vmem:[#allocation4 + $0x18] sm:$0xf]
    %v653 = vld [vmem:[#allocation4 + $0x1c] sm:$0xf]
    %v654 = vld [vmem:[#allocation4 + $0x20] sm:$0xf]
    %v655 = vld [vmem:[#allocation4 + $0x24] sm:$0xf]
    %v656 = vld [vmem:[#allocation4 + $0x28] sm:$0xf]
    %v657 = vld [vmem:[#allocation4 + $0x2c] sm:$0xf]
    %v658 = vld [vmem:[#allocation4 + $0x30] sm:$0xf]
    %v659 = vld [vmem:[#allocation4 + $0x34] sm:$0xf]
    %v660 = vld [vmem:[#allocation4 + $0x38] sm:$0xf]
    %v661 = vld [vmem:[#allocation4 + $0x3c] sm:$0xf]
    %v662 = vld [vmem:[%s7] sm:$0x1]
    %v664 = vlaneseq
    %v665 = vshrl.u32 %v664, 7
    %v666 = vsub.s32 0, %v665
    %v667 = vrot.slane %v662, %v666
    %v685 = vunpack.c.l.b16 %v646
    %v686 = vunpack.c.l.b16 %v647
    %v687 = vunpack.c.l.b16 %v648
    %v688 = vunpack.c.l.b16 %v649
    %v689 = vunpack.c.l.b16 %v650
    %v690 = vunpack.c.l.b16 %v651
    %v691 = vunpack.c.l.b16 %v652
    %v692 = vunpack.c.l.b16 %v653
    %v693 = vunpack.c.l.b16 %v654
    %v694 = vunpack.c.l.b16 %v655
    %v695 = vunpack.c.l.b16 %v656
    %v696 = vunpack.c.l.b16 %v657
    %v697 = vunpack.c.l.b16 %v658
    %v698 = vunpack.c.l.b16 %v659
    %v699 = vunpack.c.l.b16 %v660
    %v700 = vunpack.c.l.b16 %v661
    %v701 = vpack.c.b16 %v686, %v685
    %v702 = vpack.c.b16 %v688, %v687
    %v703 = vpack.c.b16 %v690, %v689
    %v704 = vpack.c.b16 %v692, %v691
    %v705 = vpack.c.b16 %v694, %v693
    %v706 = vpack.c.b16 %v696, %v695
    %v707 = vpack.c.b16 %v698, %v697
    %v708 = vpack.c.b16 %v700, %v699
    %717 = vmatprep.subr.bf16.mxu0 0
    %718 = vmatpush1.bf16.msra.mxu0 %v701
    %719 = vmatprep.subr.bf16.mxu0 0
    %720 = vmatpush1.bf16.msra.mxu0 %v702
    %721 = vmatprep.subr.bf16.mxu0 0
    %722 = vmatpush1.bf16.msra.mxu0 %v703
    %723 = vmatprep.subr.bf16.mxu0 0
    %724 = vmatpush1.bf16.msra.mxu0 %v704
    %725 = vmatprep.subr.bf16.mxu0 0
    %726 = vmatpush1.bf16.msra.mxu0 %v705
    %727 = vmatprep.subr.bf16.mxu0 0
    %728 = vmatpush1.bf16.msra.mxu0 %v706
    %729 = vmatprep.subr.bf16.mxu0 0
    %730 = vmatpush1.bf16.msra.mxu0 %v707
    %731 = vmatprep.subr.bf16.mxu0 0
    %732 = vmatpush1.bf16.msra.mxu0 %v708
    %733 = vmatprep.subr.bf16.mxu0 0
    %734 = vmatpush1.bf16.msra.mxu0 0
    %735 = vmatprep.subr.bf16.mxu0 0
    %736 = vmatpush1.bf16.msra.mxu0 0
    %737 = vmatprep.subr.bf16.mxu0 0
    %738 = vmatpush1.bf16.msra.mxu0 0
    %739 = vmatprep.subr.bf16.mxu0 0
    %740 = vmatpush1.bf16.msra.mxu0 0
    %741 = vmatprep.subr.bf16.mxu0 0
    %742 = vmatpush1.bf16.msra.mxu0 0
    %743 = vmatprep.subr.bf16.mxu0 0
    %744 = vmatpush1.bf16.msra.mxu0 0
    %745 = vmatprep.subr.bf16.mxu0 0
    %746 = vmatpush1.bf16.msra.mxu0 0
    %747 = vmatprep.subr.bf16.mxu0 0
    %748 = vmatpush1.bf16.msra.mxu0 0
    %749 = vmatprep.mubr.bf16.mxu0 0
    %750 = vmatmul.mubr.bf16.gmra.mrb[0].mxu0 %v645
    %v751 = vpop.f32.mrb[0].mxu0
    %v752 = vadd.f32 %v667, %v751
    %v753 = vpop.f32.mrb[0].mxu0
    %v754 = vpop.f32.mrb[0].mxu0
    %v755 = vadd.f32 %v667, %v754
    %v756 = vpop.f32.mrb[0].mxu0
    %757 = vdwg.mxu0
    %v758 = vpack.c.bf16 %v755, %v752
    %v759 = vld [vmem:[%s8] sm:$0xff]
    %v760 = vld [vmem:[%s8 + $0x8] sm:$0xff]
    %v761 = vld [vmem:[%s8 + $0x10] sm:$0xff]
    %v762 = vld [vmem:[%s8 + $0x18] sm:$0xff]
    %v763 = vld [vmem:[%s8 + $0x20] sm:$0xff]
    %v764 = vld [vmem:[%s8 + $0x28] sm:$0xff]
    %v765 = vld [vmem:[%s8 + $0x30] sm:$0xff]
    %v766 = vld [vmem:[%s8 + $0x38] sm:$0xff]
    %v767 = vld [vmem:[%s8 + $0x40] sm:$0xff]
    %v768 = vld [vmem:[%s8 + $0x48] sm:$0xff]
    %v769 = vld [vmem:[%s8 + $0x50] sm:$0xff]
    %v770 = vld [vmem:[%s8 + $0x58] sm:$0xff]
    %v771 = vld [vmem:[%s8 + $0x60] sm:$0xff]
    %v772 = vld [vmem:[%s8 + $0x68] sm:$0xff]
    %v773 = vld [vmem:[%s8 + $0x70] sm:$0xff]
    %v774 = vld [vmem:[%s8 + $0x78] sm:$0xff]
    %v775 = vld [vmem:[%s8 + $0x80] sm:$0xff]
    %v776 = vld [vmem:[%s8 + $0x88] sm:$0xff]
    %v777 = vld [vmem:[%s8 + $0x90] sm:$0xff]
    %v778 = vld [vmem:[%s8 + $0x98] sm:$0xff]
    %v779 = vld [vmem:[%s8 + $0xa0] sm:$0xff]
    %v780 = vld [vmem:[%s8 + $0xa8] sm:$0xff]
    %v781 = vld [vmem:[%s8 + $0xb0] sm:$0xff]
    %v782 = vld [vmem:[%s8 + $0xb8] sm:$0xff]
    %v783 = vld [vmem:[%s8 + $0xc0] sm:$0xff]
    %v784 = vld [vmem:[%s8 + $0xc8] sm:$0xff]
    %v785 = vld [vmem:[%s8 + $0xd0] sm:$0xff]
    %v786 = vld [vmem:[%s8 + $0xd8] sm:$0xff]
    %v787 = vld [vmem:[%s8 + $0xe0] sm:$0xff]
    %v788 = vld [vmem:[%s8 + $0xe8] sm:$0xff]
    %v789 = vld [vmem:[%s8 + $0xf0] sm:$0xff]
    %v790 = vld [vmem:[%s8 + $0xf8] sm:$0xff]
    %v791 = vld [vmem:[%s9] sm:$0xf]
    %v793 = vlaneseq
    %v794 = vshrl.u32 %v793, 7
    %v795 = vsub.s32 0, %v794
    %v796 = vrot.slane %v791, %v795
    %v797 = vlaneseq
    %v798 = vshrl.u32 %v797, 7
    %v799 = vsub.s32 1, %v798
    %v800 = vrot.slane %v791, %v799
    %v801 = vlaneseq
    %v802 = vshrl.u32 %v801, 7
    %v803 = vsub.s32 2, %v802
    %v804 = vrot.slane %v791, %v803
    %v805 = vlaneseq
    %v806 = vshrl.u32 %v805, 7
    %v807 = vsub.s32 3, %v806
    %v808 = vrot.slane %v791, %v807
    %v845 = vunpack.c.l.b16 %v759
    %v846 = vunpack.c.h.b16 %v759
    %v847 = vunpack.c.l.b16 %v760
    %v848 = vunpack.c.h.b16 %v760
    %v849 = vunpack.c.l.b16 %v761
    %v850 = vunpack.c.h.b16 %v761
    %v851 = vunpack.c.l.b16 %v762
    %v852 = vunpack.c.h.b16 %v762
    %v853 = vunpack.c.l.b16 %v763
    %v854 = vunpack.c.h.b16 %v763
    %v855 = vunpack.c.l.b16 %v764
    %v856 = vunpack.c.h.b16 %v764
    %v857 = vunpack.c.l.b16 %v765
    %v858 = vunpack.c.h.b16 %v765
    %v859 = vunpack.c.l.b16 %v766
    %v860 = vunpack.c.h.b16 %v766
    %v861 = vunpack.c.l.b16 %v767
    %v862 = vunpack.c.h.b16 %v767
    %v863 = vunpack.c.l.b16 %v768
    %v864 = vunpack.c.h.b16 %v768
    %v865 = vunpack.c.l.b16 %v769
    %v866 = vunpack.c.h.b16 %v769
    %v867 = vunpack.c.l.b16 %v770
    %v868 = vunpack.c.h.b16 %v770
    %v869 = vunpack.c.l.b16 %v771
    %v870 = vunpack.c.h.b16 %v771
    %v871 = vunpack.c.l.b16 %v772
    %v872 = vunpack.c.h.b16 %v772
    %v873 = vunpack.c.l.b16 %v773
    %v874 = vunpack.c.h.b16 %v773
    %v875 = vunpack.c.l.b16 %v774
    %v876 = vunpack.c.h.b16 %v774
    %v877 = vunpack.c.l.b16 %v775
    %v878 = vunpack.c.h.b16 %v775
    %v879 = vunpack.c.l.b16 %v776
    %v880 = vunpack.c.h.b16 %v776
    %v881 = vunpack.c.l.b16 %v777
    %v882 = vunpack.c.h.b16 %v777
    %v883 = vunpack.c.l.b16 %v778
    %v884 = vunpack.c.h.b16 %v778
    %v885 = vunpack.c.l.b16 %v779
    %v886 = vunpack.c.h.b16 %v779
    %v887 = vunpack.c.l.b16 %v780
    %v888 = vunpack.c.h.b16 %v780
    %v889 = vunpack.c.l.b16 %v781
    %v890 = vunpack.c.h.b16 %v781
    %v891 = vunpack.c.l.b16 %v782
    %v892 = vunpack.c.h.b16 %v782
    %v893 = vunpack.c.l.b16 %v783
    %v894 = vunpack.c.h.b16 %v783
    %v895 = vunpack.c.l.b16 %v784
    %v896 = vunpack.c.h.b16 %v784
    %v897 = vunpack.c.l.b16 %v785
    %v898 = vunpack.c.h.b16 %v785
    %v899 = vunpack.c.l.b16 %v786
    %v900 = vunpack.c.h.b16 %v786
    %v901 = vunpack.c.l.b16 %v787
    %v902 = vunpack.c.h.b16 %v787
    %v903 = vunpack.c.l.b16 %v788
    %v904 = vunpack.c.h.b16 %v788
    %v905 = vunpack.c.l.b16 %v789
    %v906 = vunpack.c.h.b16 %v789
    %v907 = vunpack.c.l.b16 %v790
    %v908 = vunpack.c.h.b16 %v790
    %v909 = vpack.c.b16 %v849, %v845
    %v910 = vpack.c.b16 %v850, %v846
    %v911 = vpack.c.b16 %v851, %v847
    %v912 = vpack.c.b16 %v852, %v848
    %v913 = vpack.c.b16 %v857, %v853
    %v914 = vpack.c.b16 %v858, %v854
    %v915 = vpack.c.b16 %v859, %v855
    %v916 = vpack.c.b16 %v860, %v856
    %v917 = vpack.c.b16 %v865, %v861
    %v918 = vpack.c.b16 %v866, %v862
    %v919 = vpack.c.b16 %v867, %v863
    %v920 = vpack.c.b16 %v868, %v864
    %v921 = vpack.c.b16 %v873, %v869
    %v922 = vpack.c.b16 %v874, %v870
    %v923 = vpack.c.b16 %v875, %v871
    %v924 = vpack.c.b16 %v876, %v872
    %v925 = vpack.c.b16 %v881, %v877
    %v926 = vpack.c.b16 %v882, %v878
    %v927 = vpack.c.b16 %v883, %v879
    %v928 = vpack.c.b16 %v884, %v880
    %v929 = vpack.c.b16 %v889, %v885
    %v930 = vpack.c.b16 %v890, %v886
    %v931 = vpack.c.b16 %v891, %v887
    %v932 = vpack.c.b16 %v892, %v888
    %v933 = vpack.c.b16 %v897, %v893
    %v934 = vpack.c.b16 %v898, %v894
    %v935 = vpack.c.b16 %v899, %v895
    %v936 = vpack.c.b16 %v900, %v896
    %v937 = vpack.c.b16 %v905, %v901
    %v938 = vpack.c.b16 %v906, %v902
    %v939 = vpack.c.b16 %v907, %v903
    %v940 = vpack.c.b16 %v908, %v904
    %973 = vmatprep.subr.bf16.mxu0 %v910
    %974 = vmatpush1.bf16.msra.mxu0 %v909
    %975 = vmatprep.subr.bf16.mxu0 %v914
    %976 = vmatpush1.bf16.msra.mxu0 %v913
    %977 = vmatprep.subr.bf16.mxu0 %v918
    %978 = vmatpush1.bf16.msra.mxu0 %v917
    %979 = vmatprep.subr.bf16.mxu0 %v922
    %980 = vmatpush1.bf16.msra.mxu0 %v921
    %981 = vmatprep.subr.bf16.mxu0 %v926
    %982 = vmatpush1.bf16.msra.mxu0 %v925
    %983 = vmatprep.subr.bf16.mxu0 %v930
    %984 = vmatpush1.bf16.msra.mxu0 %v929
    %985 = vmatprep.subr.bf16.mxu0 %v934
    %986 = vmatpush1.bf16.msra.mxu0 %v933
    %987 = vmatprep.subr.bf16.mxu0 %v938
    %988 = vmatpush1.bf16.msra.mxu0 %v937
    %989 = vmatprep.subr.bf16.mxu0 0
    %990 = vmatpush1.bf16.msra.mxu0 0
    %991 = vmatprep.subr.bf16.mxu0 0
    %992 = vmatpush1.bf16.msra.mxu0 0
    %993 = vmatprep.subr.bf16.mxu0 0
    %994 = vmatpush1.bf16.msra.mxu0 0
    %995 = vmatprep.subr.bf16.mxu0 0
    %996 = vmatpush1.bf16.msra.mxu0 0
    %997 = vmatprep.subr.bf16.mxu0 0
    %998 = vmatpush1.bf16.msra.mxu0 0
    %999 = vmatprep.subr.bf16.mxu0 0
    %1000 = vmatpush1.bf16.msra.mxu0 0
    %1001 = vmatprep.subr.bf16.mxu0 0
    %1002 = vmatpush1.bf16.msra.mxu0 0
    %1003 = vmatprep.subr.bf16.mxu0 0
    %1004 = vmatpush1.bf16.msra.mxu0 0
    %1005 = vmatprep.mubr.bf16.mxu0 0
    %1006 = vmatmul.mubr.bf16.gmra.mrb[0].mxu0 %v758
    %v1007 = vpop.f32.mrb[0].mxu0
    %v1008 = vadd.f32 %v796, %v1007
    %v1009 = vpop.f32.mrb[0].mxu0
    %v1010 = vadd.f32 %v800, %v1009
    %v1011 = vpop.f32.mrb[0].mxu0
    %v1012 = vadd.f32 %v796, %v1011
    %v1013 = vpop.f32.mrb[0].mxu0
    %v1014 = vadd.f32 %v800, %v1013
    %1015 = vdwg.mxu0
    %1016 = vmatprep.subr.bf16.mxu0 %v912
    %1017 = vmatpush1.bf16.msra.mxu0 %v911
    %1018 = vmatprep.subr.bf16.mxu0 %v916
    %1019 = vmatpush1.bf16.msra.mxu0 %v915
    %1020 = vmatprep.subr.bf16.mxu0 %v920
    %1021 = vmatpush1.bf16.msra.mxu0 %v919
    %1022 = vmatprep.subr.bf16.mxu0 %v924
    %1023 = vmatpush1.bf16.msra.mxu0 %v923
    %1024 = vmatprep.subr.bf16.mxu0 %v928
    %1025 = vmatpush1.bf16.msra.mxu0 %v927
    %1026 = vmatprep.subr.bf16.mxu0 %v932
    %1027 = vmatpush1.bf16.msra.mxu0 %v931
    %1028 = vmatprep.subr.bf16.mxu0 %v936
    %1029 = vmatpush1.bf16.msra.mxu0 %v935
    %1030 = vmatprep.subr.bf16.mxu0 %v940
    %1031 = vmatpush1.bf16.msra.mxu0 %v939
    %1032 = vmatprep.subr.bf16.mxu0 0
    %1033 = vmatpush1.bf16.msra.mxu0 0
    %1034 = vmatprep.subr.bf16.mxu0 0
    %1035 = vmatpush1.bf16.msra.mxu0 0
    %1036 = vmatprep.subr.bf16.mxu0 0
    %1037 = vmatpush1.bf16.msra.mxu0 0
    %1038 = vmatprep.subr.bf16.mxu0 0
    %1039 = vmatpush1.bf16.msra.mxu0 0
    %1040 = vmatprep.subr.bf16.mxu0 0
    %1041 = vmatpush1.bf16.msra.mxu0 0
    %1042 = vmatprep.subr.bf16.mxu0 0
    %1043 = vmatpush1.bf16.msra.mxu0 0
    %1044 = vmatprep.subr.bf16.mxu0 0
    %1045 = vmatpush1.bf16.msra.mxu0 0
    %1046 = vmatprep.subr.bf16.mxu0 0
    %1047 = vmatpush1.bf16.msra.mxu0 0
    %1048 = vmatprep.mubr.bf16.mxu0 0
    %1049 = vmatmul.mubr.bf16.gmra.mrb[0].mxu0 %v758
    %v1050 = vpop.f32.mrb[0].mxu0
    %v1051 = vadd.f32 %v804, %v1050
    %v1052 = vpop.f32.mrb[0].mxu0
    %v1053 = vadd.f32 %v808, %v1052
    %v1054 = vpop.f32.mrb[0].mxu0
    %v1055 = vadd.f32 %v804, %v1054
    %v1056 = vpop.f32.mrb[0].mxu0
    %v1057 = vadd.f32 %v808, %v1056
    %1058 = vdwg.mxu0
    %v1059 = vmul.f32 %v1008, 0.5
    %v1060 = vmul.f32 %v1010, 0.5
    %v1061 = vmul.f32 %v1051, 0.5
    %v1062 = vmul.f32 %v1053, 0.5
    %v1063 = vmul.f32 %v1012, 0.5
    %v1064 = vmul.f32 %v1014, 0.5
    %v1065 = vmul.f32 %v1055, 0.5
    %v1066 = vmul.f32 %v1057, 0.5
    %v1067 = vmul.f32 %v1008, 0.7978846
    %v1068 = vmul.f32 %v1010, 0.7978846
    %v1069 = vmul.f32 %v1051, 0.7978846
    %v1070 = vmul.f32 %v1053, 0.7978846
    %v1071 = vmul.f32 %v1012, 0.7978846
    %v1072 = vmul.f32 %v1014, 0.7978846
    %v1073 = vmul.f32 %v1055, 0.7978846
    %v1074 = vmul.f32 %v1057, 0.7978846
    %v1075 = vmul.f32 %v1008, 0.044715
    %v1076 = vmul.f32 %v1010, 0.044715
    %v1077 = vmul.f32 %v1051, 0.044715
    %v1078 = vmul.f32 %v1053, 0.044715
    %v1079 = vmul.f32 %v1012, 0.044715
    %v1080 = vmul.f32 %v1014, 0.044715
    %v1081 = vmul.f32 %v1055, 0.044715
    %v1082 = vmul.f32 %v1057, 0.044715
    %v1083 = vmul.f32 %v1075, %v1008
    %v1084 = vmul.f32 %v1076, %v1010
    %v1085 = vmul.f32 %v1077, %v1051
    %v1086 = vmul.f32 %v1078, %v1053
    %v1087 = vmul.f32 %v1079, %v1012
    %v1088 = vmul.f32 %v1080, %v1014
    %v1089 = vmul.f32 %v1081, %v1055
    %v1090 = vmul.f32 %v1082, %v1057
    %v1091 = vadd.f32 %v1083, 1.0
    %v1092 = vadd.f32 %v1084, 1.0
    %v1093 = vadd.f32 %v1085, 1.0
    %v1094 = vadd.f32 %v1086, 1.0
    %v1095 = vadd.f32 %v1087, 1.0
    %v1096 = vadd.f32 %v1088, 1.0
    %v1097 = vadd.f32 %v1089, 1.0
    %v1098 = vadd.f32 %v1090, 1.0
    %v1099 = vmul.f32 %v1067, %v1091
    %v1100 = vmul.f32 %v1068, %v1092
    %v1101 = vmul.f32 %v1069, %v1093
    %v1102 = vmul.f32 %v1070, %v1094
    %v1103 = vmul.f32 %v1071, %v1095
    %v1104 = vmul.f32 %v1072, %v1096
    %v1105 = vmul.f32 %v1073, %v1097
    %v1106 = vmul.f32 %v1074, %v1098
    %v1107 = vtanh.pop %v1099
    %v1108 = vtanh.pop %v1100
    %v1109 = vtanh.pop %v1101
    %v1110 = vtanh.pop %v1102
    %v1111 = vtanh.pop %v1103
    %v1112 = vtanh.pop %v1104
    %v1113 = vtanh.pop %v1105
    %v1114 = vtanh.pop %v1106
    %v1115 = vadd.f32 %v1107, 1.0
    %v1116 = vadd.f32 %v1108, 1.0
    %v1117 = vadd.f32 %v1109, 1.0
    %v1118 = vadd.f32 %v1110, 1.0
    %v1119 = vadd.f32 %v1111, 1.0
    %v1120 = vadd.f32 %v1112, 1.0
    %v1121 = vadd.f32 %v1113, 1.0
    %v1122 = vadd.f32 %v1114, 1.0
    %v1123 = vmul.f32 %v1059, %v1115
    %v1124 = vmul.f32 %v1060, %v1116
    %v1125 = vmul.f32 %v1061, %v1117
    %v1126 = vmul.f32 %v1062, %v1118
    %v1127 = vmul.f32 %v1063, %v1119
    %v1128 = vmul.f32 %v1064, %v1120
    %v1129 = vmul.f32 %v1065, %v1121
    %v1130 = vmul.f32 %v1066, %v1122
    %v1131 = vpack.c.bf16 %v1127, %v1123
    %v1132 = vpack.c.bf16 %v1128, %v1124
    %v1133 = vpack.c.bf16 %v1129, %v1125
    %v1134 = vpack.c.bf16 %v1130, %v1126
    %v1135 = vld [vmem:[%s10] sm:$0xf]
    %v1136 = vld [vmem:[%s10 + $0x4] sm:$0xf]
    %v1137 = vld [vmem:[%s10 + $0x8] sm:$0xf]
    %v1138 = vld [vmem:[%s10 + $0xc] sm:$0xf]
    %v1139 = vld [vmem:[%s10 + $0x10] sm:$0xf]
    %v1140 = vld [vmem:[%s10 + $0x14] sm:$0xf]
    %v1141 = vld [vmem:[%s10 + $0x18] sm:$0xf]
    %v1142 = vld [vmem:[%s10 + $0x1c] sm:$0xf]
    %v1143 = vld [vmem:[%s10 + $0x20] sm:$0xf]
    %v1144 = vld [vmem:[%s10 + $0x24] sm:$0xf]
    %v1145 = vld [vmem:[%s10 + $0x28] sm:$0xf]
    %v1146 = vld [vmem:[%s10 + $0x2c] sm:$0xf]
    %v1147 = vld [vmem:[%s10 + $0x30] sm:$0xf]
    %v1148 = vld [vmem:[%s10 + $0x34] sm:$0xf]
    %v1149 = vld [vmem:[%s10 + $0x38] sm:$0xf]
    %v1150 = vld [vmem:[%s10 + $0x3c] sm:$0xf]
    %v1151 = vld [vmem:[%s10 + $0x40] sm:$0xf]
    %v1152 = vld [vmem:[%s10 + $0x44] sm:$0xf]
    %v1153 = vld [vmem:[%s10 + $0x48] sm:$0xf]
    %v1154 = vld [vmem:[%s10 + $0x4c] sm:$0xf]
    %v1155 = vld [vmem:[%s10 + $0x50] sm:$0xf]
    %v1156 = vld [vmem:[%s10 + $0x54] sm:$0xf]
    %v1157 = vld [vmem:[%s10 + $0x58] sm:$0xf]
    %v1158 = vld [vmem:[%s10 + $0x5c] sm:$0xf]
    %v1159 = vld [vmem:[%s10 + $0x60] sm:$0xf]
    %v1160 = vld [vmem:[%s10 + $0x64] sm:$0xf]
    %v1161 = vld [vmem:[%s10 + $0x68] sm:$0xf]
    %v1162 = vld [vmem:[%s10 + $0x6c] sm:$0xf]
    %v1163 = vld [vmem:[%s10 + $0x70] sm:$0xf]
    %v1164 = vld [vmem:[%s10 + $0x74] sm:$0xf]
    %v1165 = vld [vmem:[%s10 + $0x78] sm:$0xf]
    %v1166 = vld [vmem:[%s10 + $0x7c] sm:$0xf]
    %v1167 = vld [vmem:[%s10 + $0x80] sm:$0xf]
    %v1168 = vld [vmem:[%s10 + $0x84] sm:$0xf]
    %v1169 = vld [vmem:[%s10 + $0x88] sm:$0xf]
    %v1170 = vld [vmem:[%s10 + $0x8c] sm:$0xf]
    %v1171 = vld [vmem:[%s10 + $0x90] sm:$0xf]
    %v1172 = vld [vmem:[%s10 + $0x94] sm:$0xf]
    %v1173 = vld [vmem:[%s10 + $0x98] sm:$0xf]
    %v1174 = vld [vmem:[%s10 + $0x9c] sm:$0xf]
    %v1175 = vld [vmem:[%s10 + $0xa0] sm:$0xf]
    %v1176 = vld [vmem:[%s10 + $0xa4] sm:$0xf]
    %v1177 = vld [vmem:[%s10 + $0xa8] sm:$0xf]
    %v1178 = vld [vmem:[%s10 + $0xac] sm:$0xf]
    %v1179 = vld [vmem:[%s10 + $0xb0] sm:$0xf]
    %v1180 = vld [vmem:[%s10 + $0xb4] sm:$0xf]
    %v1181 = vld [vmem:[%s10 + $0xb8] sm:$0xf]
    %v1182 = vld [vmem:[%s10 + $0xbc] sm:$0xf]
    %v1183 = vld [vmem:[%s10 + $0xc0] sm:$0xf]
    %v1184 = vld [vmem:[%s10 + $0xc4] sm:$0xf]
    %v1185 = vld [vmem:[%s10 + $0xc8] sm:$0xf]
    %v1186 = vld [vmem:[%s10 + $0xcc] sm:$0xf]
    %v1187 = vld [vmem:[%s10 + $0xd0] sm:$0xf]
    %v1188 = vld [vmem:[%s10 + $0xd4] sm:$0xf]
    %v1189 = vld [vmem:[%s10 + $0xd8] sm:$0xf]
    %v1190 = vld [vmem:[%s10 + $0xdc] sm:$0xf]
    %v1191 = vld [vmem:[%s10 + $0xe0] sm:$0xf]
    %v1192 = vld [vmem:[%s10 + $0xe4] sm:$0xf]
    %v1193 = vld [vmem:[%s10 + $0xe8] sm:$0xf]
    %v1194 = vld [vmem:[%s10 + $0xec] sm:$0xf]
    %v1195 = vld [vmem:[%s10 + $0xf0] sm:$0xf]
    %v1196 = vld [vmem:[%s10 + $0xf4] sm:$0xf]
    %v1197 = vld [vmem:[%s10 + $0xf8] sm:$0xf]
    %v1198 = vld [vmem:[%s10 + $0xfc] sm:$0xf]
    %v1199 = vld [vmem:[%s11] sm:$0x1]
    %v1201 = vlaneseq
    %v1202 = vshrl.u32 %v1201, 7
    %v1203 = vsub.s32 0, %v1202
    %v1204 = vrot.slane %v1199, %v1203
    %v1270 = vunpack.c.l.b16 %v1135
    %v1271 = vunpack.c.l.b16 %v1136
    %v1272 = vunpack.c.l.b16 %v1137
    %v1273 = vunpack.c.l.b16 %v1138
    %v1274 = vunpack.c.l.b16 %v1139
    %v1275 = vunpack.c.l.b16 %v1140
    %v1276 = vunpack.c.l.b16 %v1141
    %v1277 = vunpack.c.l.b16 %v1142
    %v1278 = vunpack.c.l.b16 %v1143
    %v1279 = vunpack.c.l.b16 %v1144
    %v1280 = vunpack.c.l.b16 %v1145
    %v1281 = vunpack.c.l.b16 %v1146
    %v1282 = vunpack.c.l.b16 %v1147
    %v1283 = vunpack.c.l.b16 %v1148
    %v1284 = vunpack.c.l.b16 %v1149
    %v1285 = vunpack.c.l.b16 %v1150
    %v1286 = vunpack.c.l.b16 %v1151
    %v1287 = vunpack.c.l.b16 %v1152
    %v1288 = vunpack.c.l.b16 %v1153
    %v1289 = vunpack.c.l.b16 %v1154
    %v1290 = vunpack.c.l.b16 %v1155
    %v1291 = vunpack.c.l.b16 %v1156
    %v1292 = vunpack.c.l.b16 %v1157
    %v1293 = vunpack.c.l.b16 %v1158
    %v1294 = vunpack.c.l.b16 %v1159
    %v1295 = vunpack.c.l.b16 %v1160
    %v1296 = vunpack.c.l.b16 %v1161
    %v1297 = vunpack.c.l.b16 %v1162
    %v1298 = vunpack.c.l.b16 %v1163
    %v1299 = vunpack.c.l.b16 %v1164
    %v1300 = vunpack.c.l.b16 %v1165
    %v1301 = vunpack.c.l.b16 %v1166
    %v1302 = vunpack.c.l.b16 %v1167
    %v1303 = vunpack.c.l.b16 %v1168
    %v1304 = vunpack.c.l.b16 %v1169
    %v1305 = vunpack.c.l.b16 %v1170
    %v1306 = vunpack.c.l.b16 %v1171
    %v1307 = vunpack.c.l.b16 %v1172
    %v1308 = vunpack.c.l.b16 %v1173
    %v1309 = vunpack.c.l.b16 %v1174
    %v1310 = vunpack.c.l.b16 %v1175
    %v1311 = vunpack.c.l.b16 %v1176
    %v1312 = vunpack.c.l.b16 %v1177
    %v1313 = vunpack.c.l.b16 %v1178
    %v1314 = vunpack.c.l.b16 %v1179
    %v1315 = vunpack.c.l.b16 %v1180
    %v1316 = vunpack.c.l.b16 %v1181
    %v1317 = vunpack.c.l.b16 %v1182
    %v1318 = vunpack.c.l.b16 %v1183
    %v1319 = vunpack.c.l.b16 %v1184
    %v1320 = vunpack.c.l.b16 %v1185
    %v1321 = vunpack.c.l.b16 %v1186
    %v1322 = vunpack.c.l.b16 %v1187
    %v1323 = vunpack.c.l.b16 %v1188
    %v1324 = vunpack.c.l.b16 %v1189
    %v1325 = vunpack.c.l.b16 %v1190
    %v1326 = vunpack.c.l.b16 %v1191
    %v1327 = vunpack.c.l.b16 %v1192
    %v1328 = vunpack.c.l.b16 %v1193
    %v1329 = vunpack.c.l.b16 %v1194
    %v1330 = vunpack.c.l.b16 %v1195
    %v1331 = vunpack.c.l.b16 %v1196
    %v1332 = vunpack.c.l.b16 %v1197
    %v1333 = vunpack.c.l.b16 %v1198
    %v1334 = vpack.c.b16 %v1271, %v1270
    %v1335 = vpack.c.b16 %v1273, %v1272
    %v1336 = vpack.c.b16 %v1275, %v1274
    %v1337 = vpack.c.b16 %v1277, %v1276
    %v1338 = vpack.c.b16 %v1279, %v1278
    %v1339 = vpack.c.b16 %v1281, %v1280
    %v1340 = vpack.c.b16 %v1283, %v1282
    %v1341 = vpack.c.b16 %v1285, %v1284
    %v1342 = vpack.c.b16 %v1287, %v1286
    %v1343 = vpack.c.b16 %v1289, %v1288
    %v1344 = vpack.c.b16 %v1291, %v1290
    %v1345 = vpack.c.b16 %v1293, %v1292
    %v1346 = vpack.c.b16 %v1295, %v1294
    %v1347 = vpack.c.b16 %v1297, %v1296
    %v1348 = vpack.c.b16 %v1299, %v1298
    %v1349 = vpack.c.b16 %v1301, %v1300
    %v1350 = vpack.c.b16 %v1303, %v1302
    %v1351 = vpack.c.b16 %v1305, %v1304
    %v1352 = vpack.c.b16 %v1307, %v1306
    %v1353 = vpack.c.b16 %v1309, %v1308
    %v1354 = vpack.c.b16 %v1311, %v1310
    %v1355 = vpack.c.b16 %v1313, %v1312
    %v1356 = vpack.c.b16 %v1315, %v1314
    %v1357 = vpack.c.b16 %v1317, %v1316
    %v1358 = vpack.c.b16 %v1319, %v1318
    %v1359 = vpack.c.b16 %v1321, %v1320
    %v1360 = vpack.c.b16 %v1323, %v1322
    %v1361 = vpack.c.b16 %v1325, %v1324
    %v1362 = vpack.c.b16 %v1327, %v1326
    %v1363 = vpack.c.b16 %v1329, %v1328
    %v1364 = vpack.c.b16 %v1331, %v1330
    %v1365 = vpack.c.b16 %v1333, %v1332
    %1398 = vmatprep.subr.bf16.mxu0 0
    %1399 = vmatpush1.bf16.msra.mxu0 %v1334
    %1400 = vmatprep.subr.bf16.mxu0 0
    %1401 = vmatpush1.bf16.msra.mxu0 %v1335
    %1402 = vmatprep.subr.bf16.mxu0 0
    %1403 = vmatpush1.bf16.msra.mxu0 %v1336
    %1404 = vmatprep.subr.bf16.mxu0 0
    %1405 = vmatpush1.bf16.msra.mxu0 %v1337
    %1406 = vmatprep.subr.bf16.mxu0 0
    %1407 = vmatpush1.bf16.msra.mxu0 %v1338
    %1408 = vmatprep.subr.bf16.mxu0 0
    %1409 = vmatpush1.bf16.msra.mxu0 %v1339
    %1410 = vmatprep.subr.bf16.mxu0 0
    %1411 = vmatpush1.bf16.msra.mxu0 %v1340
    %1412 = vmatprep.subr.bf16.mxu0 0
    %1413 = vmatpush1.bf16.msra.mxu0 %v1341
    %1414 = vmatprep.subr.bf16.mxu0 0
    %1415 = vmatpush1.bf16.msra.mxu0 %v1342
    %1416 = vmatprep.subr.bf16.mxu0 0
    %1417 = vmatpush1.bf16.msra.mxu0 %v1343
    %1418 = vmatprep.subr.bf16.mxu0 0
    %1419 = vmatpush1.bf16.msra.mxu0 %v1344
    %1420 = vmatprep.subr.bf16.mxu0 0
    %1421 = vmatpush1.bf16.msra.mxu0 %v1345
    %1422 = vmatprep.subr.bf16.mxu0 0
    %1423 = vmatpush1.bf16.msra.mxu0 %v1346
    %1424 = vmatprep.subr.bf16.mxu0 0
    %1425 = vmatpush1.bf16.msra.mxu0 %v1347
    %1426 = vmatprep.subr.bf16.mxu0 0
    %1427 = vmatpush1.bf16.msra.mxu0 %v1348
    %1428 = vmatprep.subr.bf16.mxu0 0
    %1429 = vmatpush1.bf16.msra.mxu0 %v1349
    %1430 = vmatprep.mubr.bf16.mxu0 %v1132
    %1431 = vmatmul.mubr.bf16.gmra.mrb[0].mxu0 %v1131
    %v1432 = vpop.f32.mrb[0].mxu0
    %v1433 = vadd.f32 %v1204, %v1432
    %v1434 = vpop.f32.mrb[0].mxu0
    %v1435 = vpop.f32.mrb[0].mxu0
    %v1436 = vadd.f32 %v1204, %v1435
    %v1437 = vpop.f32.mrb[0].mxu0
    %1438 = vdwg.mxu0
    %1439 = vmatprep.subr.bf16.mxu0 0
    %1440 = vmatpush1.bf16.msra.mxu0 %v1350
    %1441 = vmatprep.subr.bf16.mxu0 0
    %1442 = vmatpush1.bf16.msra.mxu0 %v1351
    %1443 = vmatprep.subr.bf16.mxu0 0
    %1444 = vmatpush1.bf16.msra.mxu0 %v1352
    %1445 = vmatprep.subr.bf16.mxu0 0
    %1446 = vmatpush1.bf16.msra.mxu0 %v1353
    %1447 = vmatprep.subr.bf16.mxu0 0
    %1448 = vmatpush1.bf16.msra.mxu0 %v1354
    %1449 = vmatprep.subr.bf16.mxu0 0
    %1450 = vmatpush1.bf16.msra.mxu0 %v1355
    %1451 = vmatprep.subr.bf16.mxu0 0
    %1452 = vmatpush1.bf16.msra.mxu0 %v1356
    %1453 = vmatprep.subr.bf16.mxu0 0
    %1454 = vmatpush1.bf16.msra.mxu0 %v1357
    %1455 = vmatprep.subr.bf16.mxu0 0
    %1456 = vmatpush1.bf16.msra.mxu0 %v1358
    %1457 = vmatprep.subr.bf16.mxu0 0
    %1458 = vmatpush1.bf16.msra.mxu0 %v1359
    %1459 = vmatprep.subr.bf16.mxu0 0
    %1460 = vmatpush1.bf16.msra.mxu0 %v1360
    %1461 = vmatprep.subr.bf16.mxu0 0
    %1462 = vmatpush1.bf16.msra.mxu0 %v1361
    %1463 = vmatprep.subr.bf16.mxu0 0
    %1464 = vmatpush1.bf16.msra.mxu0 %v1362
    %1465 = vmatprep.subr.bf16.mxu0 0
    %1466 = vmatpush1.bf16.msra.mxu0 %v1363
    %1467 = vmatprep.subr.bf16.mxu0 0
    %1468 = vmatpush1.bf16.msra.mxu0 %v1364
    %1469 = vmatprep.subr.bf16.mxu0 0
    %1470 = vmatpush1.bf16.msra.mxu0 %v1365
    %1471 = vmatprep.mubr.bf16.mxu0 %v1134
    %1472 = vmatmul.mubr.bf16.gmra.mrb[0].mxu0 %v1133
    %v1473 = vpop.f32.mrb[0].mxu0
    %v1474 = vadd.f32 %v1433, %v1473
    %v1475 = vpop.f32.mrb[0].mxu0
    %v1476 = vpop.f32.mrb[0].mxu0
    %v1477 = vadd.f32 %v1436, %v1476
    %v1478 = vpop.f32.mrb[0].mxu0
    %1479 = vdwg.mxu0
    %vm1480 = vcmask 64512
    %1481 = vst.msk [vmem:[%s12] sm:$0xff] %vm1480, %v1474
    %1482 = vst.msk [vmem:[%s12 + $0x8] sm:$0xff] %vm1480, %v1477
    // Predicated region
    $region58: #{tpu_custom_call.1} parent=1 // pred_check
      _
    $region59: #{tpu_custom_call.1} parent=1 // pred_check_branch
      %1484 = sbr.rel (0) target = $region61
    $region60: #{tpu_custom_call.1} parent=1 // pred_region
      _
    $region61: #{tpu_custom_call.1} parent=1 // pred_fallthru
      _
    // Predicated region
    $region62: #{tpu_custom_call.1} parent=1 // pred_check
      _
    $region63: #{tpu_custom_call.1} parent=1 // pred_check_branch
      %1486 = sbr.rel (0) target = $region65
    $region64: #{tpu_custom_call.1} parent=1 // pred_region
      _
    $region65: #{tpu_custom_call.1} parent=1 // pred_fallthru
      _
    %1487 = vsyncpa [#allocation3], 1
    %1488 = vsyncpa [#allocation5], 1

</llo_original>
